<compile_context>
chip_gen: v6e
topology: v6e:2x2x1
jax: 0.10.0
libtpu: 0.0.40
codegen_flags: <defaults>
</compile_context>

<pallas_src>
import functools

import jax
import jax.numpy as jnp
from jax import lax
from jax.experimental import pallas as pl
from jax.experimental.pallas import tpu as pltpu


# Channel plan (reference module is a stub; small canonical widths chosen).
C_BR0, C_B1R, C_B2R = 8, 6, 6      # 1x1 outputs: branch0 / branch1-reduce / branch2-reduce
C_BR = 8                           # final width of every branch
OUT_C = 4 * C_BR                   # 32
C_SLOT = 16                        # per-tap channel slot (bf16 sublane tile) in the im2col K layout
K_PACK = 9 * C_SLOT                # contraction depth of every stage matmul (144)


# ----------------------------------------------------------------------------
# Fused Pallas kernel: whole Inception block, 3 matmul stages per image.
# Layout: channels in sublanes, flattened zero-padded spatial (H+2)*(W+2) in
# lanes.  A 3x3 tap at (dh, dw) is a pure lane shift by (dh-1)*(W+2)+(dw-1) of
# a buffer extended by EXT zeros on each side; shifted reads that land in the
# padding rows/cols read exact zeros, and outputs at padding positions are
# discarded (cropped in the wrapper) or masked to zero before feeding the next
# stage.
# ----------------------------------------------------------------------------
def _inception_kernel(xe_ref, mask_ref,
                      wA_ref, bA_ref, wB_ref, bB_ref, wC_ref, bC_ref,
                      o_ref, ext_ref, pat_ref, *, H, W, NB):
    Wp = W + 2
    L = (H + 2) * Wp               # flattened padded spatial size (lanes)
    EXT = Wp + 1                   # max |lane shift| of a 3x3 tap
    CS = C_SLOT
    f32 = jnp.float32
    bf16 = jnp.bfloat16

    # Re-zero the small intermediate buffer each grid step (~3 vregs): its lane
    # extensions and unused channel rows must read as exact zeros for border
    # taps / zero-weight slack rows.  (Cheaper than 4 masked strip stores and
    # safe under megacore 'parallel' splitting.)
    ext_ref[...] = jnp.zeros_like(ext_ref)

    # tap t = dh*3 + dw  ->  lane offset EXT + (dh-1)*Wp + (dw-1) in [0, 2*EXT]
    taps = [(t, EXT + (t // 3 - 1) * Wp + (t % 3 - 1)) for t in range(9)]

    def im2col(src_ref):
        # src_ref: (C_SLOT, L + 2*EXT) bf16 -> fill (144, L) im2col scratch.
        for t, s in taps:
            pat_ref[t * CS:(t + 1) * CS, :] = src_ref[:, s:s + L]

    def stage(w_ref, b_ref):
        # one MXU matmul per stage: (Cout, 144) @ (144, L) -> f32, bias, ReLU.
        y = jnp.dot(w_ref[...], pat_ref[...], preferred_element_type=f32)
        return jnp.maximum(y + b_ref[...], 0.0)

    mask = mask_ref[...]                                # (1, L): 1 at interior

    for b in range(NB):
        # --- stage A: merged 1x1s (br0 / b1r / b2r) + folded pool->1x1 branch3
        im2col(xe_ref.at[b])
        yA = stage(wA_ref, bA_ref)                      # (28, L)
        # rows: 0:8 br0 | 8:16 br3 | 16:22 b1-reduce | 22:28 b2-reduce

        # --- stage B: branch1 3x3 + branch2 first 3x3 (block-diagonal weights)
        ext_ref[0:12, EXT:EXT + L] = (yA[16:28] * mask).astype(bf16)
        im2col(ext_ref)
        yB = stage(wB_ref, bB_ref)                      # (16, L): 0:8 br1 | 8:16 b2a

        # --- stage C: branch2 second 3x3
        ext_ref[0:8, EXT:EXT + L] = (yB[8:16] * mask).astype(bf16)
        im2col(ext_ref)
        yC = stage(wC_ref, bC_ref)                      # (8, L) = br2

        # --- lane-dense NCHW-flat output stores (interior cropped in wrapper)
        o_ref[b, 0:8, :] = yA[0:8]                      # branch0
        o_ref[b, 8:16, :] = yB[0:8]                     # branch1
        o_ref[b, 16:24, :] = yC                         # branch2
        o_ref[b, 24:32, :] = yA[8:16]                   # branch3


def _const_spec(shape):
    nd = len(shape)
    return pl.BlockSpec(shape, lambda n, _nd=nd: (0,) * _nd)


# ----------------------------------------------------------------------------
# Wrapper: layout plumbing only (zero-pad, flatten, lane-extend, channel-pad,
# bf16 cast on the way in; reshape + interior crop on the way out — no
# transposes on either side of the kernel).
# ----------------------------------------------------------------------------
def inception_block_v4(x_nchw, params, *, images_per_step=None):
    N, C, H, W = x_nchw.shape
    Hp, Wp = H + 2, W + 2
    L = Hp * Wp
    EXT = Wp + 1
    nb = 1 if images_per_step is None else images_per_step   # keep grid >= 2 at N=2 (v7x)
    if N % nb != 0:
        raise ValueError("batch must be divisible by images_per_step")

    # padded NCHW -> flattened padded-flat lanes -> lane extension -> channel pad
    xp = jnp.pad(x_nchw, ((0, 0), (0, 0), (1, 1), (1, 1)))
    xe = jnp.pad(xp.reshape(N, C, L), ((0, 0), (0, C_SLOT - C), (EXT, EXT)))
    xe = xe.astype(jnp.bfloat16)

    # interior mask (restores the conv zero-padding on intermediate stages)
    mask = jnp.zeros((Hp, Wp), jnp.float32).at[1:H + 1, 1:W + 1].set(1.0)
    mask = mask.reshape(1, L)

    kernel = functools.partial(_inception_kernel, H=H, W=W, NB=nb)
    out = pl.pallas_call(
        kernel,
        out_shape=jax.ShapeDtypeStruct((N, OUT_C, L), jnp.float32),
        grid_spec=pltpu.PrefetchScalarGridSpec(
            num_scalar_prefetch=0,
            grid=(N // nb,),
            in_specs=[pl.BlockSpec((nb, C_SLOT, L + 2 * EXT),
                                   lambda n: (n, 0, 0)),
                      _const_spec(mask.shape),
                      _const_spec(params["wA"].shape), _const_spec(params["bA"].shape),
                      _const_spec(params["wB"].shape), _const_spec(params["bB"].shape),
                      _const_spec(params["wC"].shape), _const_spec(params["bC"].shape)],
            out_specs=pl.BlockSpec((nb, OUT_C, L), lambda n: (n, 0, 0)),
            scratch_shapes=[pltpu.VMEM((C_SLOT, L + 2 * EXT), jnp.bfloat16),
                            pltpu.VMEM((K_PACK, L), jnp.bfloat16)],
        ),
        compiler_params=pltpu.CompilerParams(
            dimension_semantics=("parallel",),
            vmem_limit_bytes=32 * 1024 * 1024),
    )(xe, mask, params["wA"], params["bA"], params["wB"], params["bB"],
      params["wC"], params["bC"])

    # padded-flat (OUT_C, L) -> NCHW interior crop; reshape+slice only, no transpose.
    return out.reshape(N, OUT_C, Hp, Wp)[:, :, 1:H + 1, 1:W + 1]


# ----------------------------------------------------------------------------
# Parameters (deterministic, in-script).  Packs the 7 torch-layout convs into
# the 3 stage matrices; returns packed params + raw weights (raw only used for
# the pure-JAX reference check).
# ----------------------------------------------------------------------------
def _pack_params(raw, cin):
    f32, bf16 = jnp.float32, jnp.bfloat16
    CS, K = C_SLOT, K_PACK
    CENTER = 4                                   # tap index of (dh=1, dw=1)

    def w1x1(w):                                 # (cout, cin, 1, 1) -> (cout, cin)
        return w[:, :, 0, 0]

    # stage A rows: [br0 (0:8) | br3 (8:16) | b1-reduce (16:22) | b2-reduce (22:28)]
    wA = jnp.zeros((28, K), f32)
    wA = wA.at[0:8, CENTER * CS:CENTER * CS + cin].set(w1x1(raw["b0_1x1"][0]))
    w3 = w1x1(raw["b3_1x1"][0]) / 9.0            # avg-pool(3x3, pad=1, /9) folded (exact)
    for t in range(9):
        wA = wA.at[8:16, t * CS:t * CS + cin].set(w3)
    wA = wA.at[16:22, CENTER * CS:CENTER * CS + cin].set(w1x1(raw["b1_1x1"][0]))
    wA = wA.at[22:28, CENTER * CS:CENTER * CS + cin].set(w1x1(raw["b2_1x1"][0]))
    bA = jnp.concatenate([raw["b0_1x1"][1], raw["b3_1x1"][1],
                          raw["b1_1x1"][1], raw["b2_1x1"][1]])[:, None]

    # stage B: block-diagonal merge; input slot rows 0:6 = b1r, 6:12 = b2r
    wB = jnp.zeros((16, K), f32)
    for dh in range(3):
        for dw in range(3):
            t = dh * 3 + dw
            wB = wB.at[0:8, t * CS + 0:t * CS + 6].set(raw["b1_3x3"][0][:, :, dh, dw])
            wB = wB.at[8:16, t * CS + 6:t * CS + 12].set(raw["b2_3x3a"][0][:, :, dh, dw])
    bB = jnp.concatenate([raw["b1_3x3"][1], raw["b2_3x3a"][1]])[:, None]

    # stage C: branch2 second 3x3; input slot rows 0:8
    wC = jnp.zeros((8, K), f32)
    for dh in range(3):
        for dw in range(3):
            t = dh * 3 + dw
            wC = wC.at[0:8, t * CS + 0:t * CS + 8].set(raw["b2_3x3b"][0][:, :, dh, dw])
    bC = raw["b2_3x3b"][1][:, None]

    return {"wA": wA.astype(bf16), "bA": bA.astype(f32),
            "wB": wB.astype(bf16), "bB": bB.astype(f32),
            "wC": wC.astype(bf16), "bC": bC.astype(f32)}


def init_params(key, cin):
    def conv_param(key, cout, cin_, k):
        wkey, bkey = jax.random.split(key)
        fan_in = cin_ * k * k
        w = jax.random.normal(wkey, (cout, cin_, k, k), jnp.float32)
        w = w * (2.0 / fan_in) ** 0.5
        b = jax.random.normal(bkey, (cout,), jnp.float32) * 0.01
        return w, b

    keys = jax.random.split(key, 7)
    raw = {
        "b0_1x1":  conv_param(keys[0], C_BR0, cin, 1),
        "b1_1x1":  conv_param(keys[1], C_B1R, cin, 1),
        "b1_3x3":  conv_param(keys[2], C_BR, C_B1R, 3),
        "b2_1x1":  conv_param(keys[3], C_B2R, cin, 1),
        "b2_3x3a": conv_param(keys[4], C_BR, C_B2R, 3),
        "b2_3x3b": conv_param(keys[5], C_BR, C_BR, 3),
        "b3_1x1":  conv_param(keys[6], C_BR, cin, 1),
    }
    return _pack_params(raw, cin), raw


# ----------------------------------------------------------------------------
# Pure-JAX/XLA reference (f32) for a numerical sanity check.
# ----------------------------------------------------------------------------
def _ref_conv(x_nhwc, wb, relu=True):
    w, b = wb
    y = lax.conv_general_dilated(
        x_nhwc, jnp.transpose(w, (2, 3, 1, 0)),
        window_strides=(1, 1), padding="SAME",
        dimension_numbers=("NHWC", "HWIO", "NHWC"))
    y = y + b
    return jnp.maximum(y, 0.0) if relu else y


def reference_forward(x_nchw, raw):
    x = jnp.transpose(x_nchw, (0, 2, 3, 1))
    br0 = _ref_conv(x, raw["b0_1x1"])
    br1 = _ref_conv(_ref_conv(x, raw["b1_1x1"]), raw["b1_3x3"])
    t = _ref_conv(x, raw["b2_1x1"])
    t = _ref_conv(t, raw["b2_3x3a"])
    br2 = _ref_conv(t, raw["b2_3x3b"])
    xp = jnp.pad(x, ((0, 0), (1, 1), (1, 1), (0, 0)))
    pooled = lax.reduce_window(xp, jnp.float32(0.0), lax.add,
                               (1, 3, 3, 1), (1, 1, 1, 1), "VALID") / 9.0
    br3 = _ref_conv(pooled, raw["b3_1x1"])
    out = jnp.concatenate([br0, br1, br2, br3], axis=-1)
    return jnp.transpose(out, (0, 3, 1, 2))


# ----------------------------------------------------------------------------
if __name__ == "__main__":
    key = jax.random.PRNGKey(0)
    xkey, pkey = jax.random.split(key)

    N, C, H, W = 2, 4, 16, 16
    x = jax.random.normal(xkey, (N, C, H, W), jnp.float32)
    params, raw = init_params(pkey, C)

    fwd = jax.jit(inception_block_v4)
    y = fwd(x, params)
    jax.block_until_ready(y)

    assert y.shape == (N, OUT_C, H, W), y.shape
    assert y.dtype == jnp.float32
    assert bool(jnp.all(jnp.isfinite(y)))

    # Numerical check vs. pure-JAX reference (kernel uses bf16 MXU inputs with
    # f32 accumulation -> loose tolerance).
    y_ref = reference_forward(x, raw)
    assert bool(jnp.allclose(y, y_ref, atol=1e-1, rtol=5e-2)), (
        float(jnp.max(jnp.abs(y - y_ref))))

    print("KERNEL_OK")
</pallas_src>

<mosaic_0001>
module attributes {stable_mosaic.version = 11 : i64} {
  func.func @_inception_kernel(%arg0: i32, %arg1: memref<1x16x362xbf16, #tpu.memory_space<vmem>>, %arg2: memref<1x324xf32, #tpu.memory_space<vmem>>, %arg3: memref<28x144xbf16, #tpu.memory_space<vmem>>, %arg4: memref<28x1xf32, #tpu.memory_space<vmem>>, %arg5: memref<16x144xbf16, #tpu.memory_space<vmem>>, %arg6: memref<16x1xf32, #tpu.memory_space<vmem>>, %arg7: memref<8x144xbf16, #tpu.memory_space<vmem>>, %arg8: memref<8x1xf32, #tpu.memory_space<vmem>>, %arg9: memref<1x32x324xf32, #tpu.memory_space<vmem>>, %arg10: memref<16x362xbf16, #tpu.memory_space<vmem>>, %arg11: memref<144x324xbf16, #tpu.memory_space<vmem>>) attributes {dimension_semantics = [#tpu.dimension_semantics<parallel>], iteration_bounds = array<i64: 2>, scalar_prefetch = 0 : i64, scratch_operands = 2 : i64, tpu.core_type = #tpu.core_type<tc>, window_params = [{transform_indices = @transform_0, window_bounds = array<i64: 1, 16, 362>}, {pipeline_mode = #tpu.pipeline_mode<synchronous>, transform_indices = @transform_1, window_bounds = array<i64: 1, 324>}, {pipeline_mode = #tpu.pipeline_mode<synchronous>, transform_indices = @transform_2, window_bounds = array<i64: 28, 144>}, {pipeline_mode = #tpu.pipeline_mode<synchronous>, transform_indices = @transform_3, window_bounds = array<i64: 28, 1>}, {pipeline_mode = #tpu.pipeline_mode<synchronous>, transform_indices = @transform_4, window_bounds = array<i64: 16, 144>}, {pipeline_mode = #tpu.pipeline_mode<synchronous>, transform_indices = @transform_5, window_bounds = array<i64: 16, 1>}, {pipeline_mode = #tpu.pipeline_mode<synchronous>, transform_indices = @transform_6, window_bounds = array<i64: 8, 144>}, {pipeline_mode = #tpu.pipeline_mode<synchronous>, transform_indices = @transform_7, window_bounds = array<i64: 8, 1>}, {transform_indices = @transform_8, window_bounds = array<i64: 1, 32, 324>}]} {
    %cst = arith.constant 0.000000e+00 : bf16
    %0 = vector.broadcast %cst : bf16 to vector<16x362xbf16>
    %c0 = arith.constant 0 : index
    %c0_0 = arith.constant 0 : index
    %1 = vector.load %arg10[%c0, %c0_0] : memref<16x362xbf16, #tpu.memory_space<vmem>>, vector<16x362xbf16>
    tpu.vector_store %arg10[%c0, %c0_0], %0 {strides = array<i32>} : memref<16x362xbf16, #tpu.memory_space<vmem>>, vector<16x362xbf16>,
    %c0_1 = arith.constant 0 : index
    %c0_2 = arith.constant 0 : index
    %2 = vector.load %arg2[%c0_1, %c0_2] : memref<1x324xf32, #tpu.memory_space<vmem>>, vector<1x324xf32>
    %c0_i32 = arith.constant 0 : i32
    %c0_i32_3 = arith.constant 0 : i32
    %c0_i32_4 = arith.constant 0 : i32
    %3 = tpu.memref_slice %arg1[%c0_i32, %c0_i32_3, %c0_i32_4] : memref<1x16x362xbf16, #tpu.memory_space<vmem>> -> memref<1x16x362xbf16, #tpu.memory_space<vmem>>
    %4 = tpu.memref_squeeze %3 : memref<1x16x362xbf16, #tpu.memory_space<vmem>> -> memref<16x362xbf16, #tpu.memory_space<vmem>>
    %c0_5 = arith.constant 0 : index
    %c0_6 = arith.constant 0 : index
    %5 = vector.load %4[%c0_5, %c0_6] : memref<16x362xbf16, #tpu.memory_space<vmem>>, vector<16x324xbf16>
    %c0_7 = arith.constant 0 : index
    %c0_8 = arith.constant 0 : index
    %6 = vector.load %arg11[%c0_7, %c0_8] : memref<144x324xbf16, #tpu.memory_space<vmem>>, vector<16x324xbf16>
    tpu.vector_store %arg11[%c0_7, %c0_8], %5 {strides = array<i32>} : memref<144x324xbf16, #tpu.memory_space<vmem>>, vector<16x324xbf16>,
    %c0_i32_9 = arith.constant 0 : i32
    %c0_i32_10 = arith.constant 0 : i32
    %c0_i32_11 = arith.constant 0 : i32
    %7 = tpu.memref_slice %arg1[%c0_i32_9, %c0_i32_10, %c0_i32_11] : memref<1x16x362xbf16, #tpu.memory_space<vmem>> -> memref<1x16x362xbf16, #tpu.memory_space<vmem>>
    %8 = tpu.memref_squeeze %7 : memref<1x16x362xbf16, #tpu.memory_space<vmem>> -> memref<16x362xbf16, #tpu.memory_space<vmem>>
    %c0_12 = arith.constant 0 : index
    %c1 = arith.constant 1 : index
    %9 = vector.load %8[%c0_12, %c1] : memref<16x362xbf16, #tpu.memory_space<vmem>>, vector<16x324xbf16>
    %c16 = arith.constant 16 : index
    %c0_13 = arith.constant 0 : index
    %10 = vector.load %arg11[%c16, %c0_13] : memref<144x324xbf16, #tpu.memory_space<vmem>>, vector<16x324xbf16>
    tpu.vector_store %arg11[%c16, %c0_13], %9 {strides = array<i32>} : memref<144x324xbf16, #tpu.memory_space<vmem>>, vector<16x324xbf16>,
    %c0_i32_14 = arith.constant 0 : i32
    %c0_i32_15 = arith.constant 0 : i32
    %c0_i32_16 = arith.constant 0 : i32
    %11 = tpu.memref_slice %arg1[%c0_i32_14, %c0_i32_15, %c0_i32_16] : memref<1x16x362xbf16, #tpu.memory_space<vmem>> -> memref<1x16x362xbf16, #tpu.memory_space<vmem>>
    %12 = tpu.memref_squeeze %11 : memref<1x16x362xbf16, #tpu.memory_space<vmem>> -> memref<16x362xbf16, #tpu.memory_space<vmem>>
    %c0_17 = arith.constant 0 : index
    %c2 = arith.constant 2 : index
    %13 = vector.load %12[%c0_17, %c2] : memref<16x362xbf16, #tpu.memory_space<vmem>>, vector<16x324xbf16>
    %c32 = arith.constant 32 : index
    %c0_18 = arith.constant 0 : index
    %14 = vector.load %arg11[%c32, %c0_18] : memref<144x324xbf16, #tpu.memory_space<vmem>>, vector<16x324xbf16>
    tpu.vector_store %arg11[%c32, %c0_18], %13 {strides = array<i32>} : memref<144x324xbf16, #tpu.memory_space<vmem>>, vector<16x324xbf16>,
    %c0_i32_19 = arith.constant 0 : i32
    %c0_i32_20 = arith.constant 0 : i32
    %c0_i32_21 = arith.constant 0 : i32
    %15 = tpu.memref_slice %arg1[%c0_i32_19, %c0_i32_20, %c0_i32_21] : memref<1x16x362xbf16, #tpu.memory_space<vmem>> -> memref<1x16x362xbf16, #tpu.memory_space<vmem>>
    %16 = tpu.memref_squeeze %15 : memref<1x16x362xbf16, #tpu.memory_space<vmem>> -> memref<16x362xbf16, #tpu.memory_space<vmem>>
    %c0_22 = arith.constant 0 : index
    %c18 = arith.constant 18 : index
    %17 = vector.load %16[%c0_22, %c18] : memref<16x362xbf16, #tpu.memory_space<vmem>>, vector<16x324xbf16>
    %c48 = arith.constant 48 : index
    %c0_23 = arith.constant 0 : index
    %18 = vector.load %arg11[%c48, %c0_23] : memref<144x324xbf16, #tpu.memory_space<vmem>>, vector<16x324xbf16>
    tpu.vector_store %arg11[%c48, %c0_23], %17 {strides = array<i32>} : memref<144x324xbf16, #tpu.memory_space<vmem>>, vector<16x324xbf16>,
    %c0_i32_24 = arith.constant 0 : i32
    %c0_i32_25 = arith.constant 0 : i32
    %c0_i32_26 = arith.constant 0 : i32
    %19 = tpu.memref_slice %arg1[%c0_i32_24, %c0_i32_25, %c0_i32_26] : memref<1x16x362xbf16, #tpu.memory_space<vmem>> -> memref<1x16x362xbf16, #tpu.memory_space<vmem>>
    %20 = tpu.memref_squeeze %19 : memref<1x16x362xbf16, #tpu.memory_space<vmem>> -> memref<16x362xbf16, #tpu.memory_space<vmem>>
    %c0_27 = arith.constant 0 : index
    %c19 = arith.constant 19 : index
    %21 = vector.load %20[%c0_27, %c19] : memref<16x362xbf16, #tpu.memory_space<vmem>>, vector<16x324xbf16>
    %c64 = arith.constant 64 : index
    %c0_28 = arith.constant 0 : index
    %22 = vector.load %arg11[%c64, %c0_28] : memref<144x324xbf16, #tpu.memory_space<vmem>>, vector<16x324xbf16>
    tpu.vector_store %arg11[%c64, %c0_28], %21 {strides = array<i32>} : memref<144x324xbf16, #tpu.memory_space<vmem>>, vector<16x324xbf16>,
    %c0_i32_29 = arith.constant 0 : i32
    %c0_i32_30 = arith.constant 0 : i32
    %c0_i32_31 = arith.constant 0 : i32
    %23 = tpu.memref_slice %arg1[%c0_i32_29, %c0_i32_30, %c0_i32_31] : memref<1x16x362xbf16, #tpu.memory_space<vmem>> -> memref<1x16x362xbf16, #tpu.memory_space<vmem>>
    %24 = tpu.memref_squeeze %23 : memref<1x16x362xbf16, #tpu.memory_space<vmem>> -> memref<16x362xbf16, #tpu.memory_space<vmem>>
    %c0_32 = arith.constant 0 : index
    %c20 = arith.constant 20 : index
    %25 = vector.load %24[%c0_32, %c20] : memref<16x362xbf16, #tpu.memory_space<vmem>>, vector<16x324xbf16>
    %c80 = arith.constant 80 : index
    %c0_33 = arith.constant 0 : index
    %26 = vector.load %arg11[%c80, %c0_33] : memref<144x324xbf16, #tpu.memory_space<vmem>>, vector<16x324xbf16>
    tpu.vector_store %arg11[%c80, %c0_33], %25 {strides = array<i32>} : memref<144x324xbf16, #tpu.memory_space<vmem>>, vector<16x324xbf16>,
    %c0_i32_34 = arith.constant 0 : i32
    %c0_i32_35 = arith.constant 0 : i32
    %c0_i32_36 = arith.constant 0 : i32
    %27 = tpu.memref_slice %arg1[%c0_i32_34, %c0_i32_35, %c0_i32_36] : memref<1x16x362xbf16, #tpu.memory_space<vmem>> -> memref<1x16x362xbf16, #tpu.memory_space<vmem>>
    %28 = tpu.memref_squeeze %27 : memref<1x16x362xbf16, #tpu.memory_space<vmem>> -> memref<16x362xbf16, #tpu.memory_space<vmem>>
    %c0_37 = arith.constant 0 : index
    %c36 = arith.constant 36 : index
    %29 = vector.load %28[%c0_37, %c36] : memref<16x362xbf16, #tpu.memory_space<vmem>>, vector<16x324xbf16>
    %c96 = arith.constant 96 : index
    %c0_38 = arith.constant 0 : index
    %30 = vector.load %arg11[%c96, %c0_38] : memref<144x324xbf16, #tpu.memory_space<vmem>>, vector<16x324xbf16>
    tpu.vector_store %arg11[%c96, %c0_38], %29 {strides = array<i32>} : memref<144x324xbf16, #tpu.memory_space<vmem>>, vector<16x324xbf16>,
    %c0_i32_39 = arith.constant 0 : i32
    %c0_i32_40 = arith.constant 0 : i32
    %c0_i32_41 = arith.constant 0 : i32
    %31 = tpu.memref_slice %arg1[%c0_i32_39, %c0_i32_40, %c0_i32_41] : memref<1x16x362xbf16, #tpu.memory_space<vmem>> -> memref<1x16x362xbf16, #tpu.memory_space<vmem>>
    %32 = tpu.memref_squeeze %31 : memref<1x16x362xbf16, #tpu.memory_space<vmem>> -> memref<16x362xbf16, #tpu.memory_space<vmem>>
    %c0_42 = arith.constant 0 : index
    %c37 = arith.constant 37 : index
    %33 = vector.load %32[%c0_42, %c37] : memref<16x362xbf16, #tpu.memory_space<vmem>>, vector<16x324xbf16>
    %c112 = arith.constant 112 : index
    %c0_43 = arith.constant 0 : index
    %34 = vector.load %arg11[%c112, %c0_43] : memref<144x324xbf16, #tpu.memory_space<vmem>>, vector<16x324xbf16>
    tpu.vector_store %arg11[%c112, %c0_43], %33 {strides = array<i32>} : memref<144x324xbf16, #tpu.memory_space<vmem>>, vector<16x324xbf16>,
    %c0_i32_44 = arith.constant 0 : i32
    %c0_i32_45 = arith.constant 0 : i32
    %c0_i32_46 = arith.constant 0 : i32
    %35 = tpu.memref_slice %arg1[%c0_i32_44, %c0_i32_45, %c0_i32_46] : memref<1x16x362xbf16, #tpu.memory_space<vmem>> -> memref<1x16x362xbf16, #tpu.memory_space<vmem>>
    %36 = tpu.memref_squeeze %35 : memref<1x16x362xbf16, #tpu.memory_space<vmem>> -> memref<16x362xbf16, #tpu.memory_space<vmem>>
    %c0_47 = arith.constant 0 : index
    %c38 = arith.constant 38 : index
    %37 = vector.load %36[%c0_47, %c38] : memref<16x362xbf16, #tpu.memory_space<vmem>>, vector<16x324xbf16>
    %c128 = arith.constant 128 : index
    %c0_48 = arith.constant 0 : index
    %38 = vector.load %arg11[%c128, %c0_48] : memref<144x324xbf16, #tpu.memory_space<vmem>>, vector<16x324xbf16>
    tpu.vector_store %arg11[%c128, %c0_48], %37 {strides = array<i32>} : memref<144x324xbf16, #tpu.memory_space<vmem>>, vector<16x324xbf16>,
    %c0_49 = arith.constant 0 : index
    %c0_50 = arith.constant 0 : index
    %39 = vector.load %arg3[%c0_49, %c0_50] : memref<28x144xbf16, #tpu.memory_space<vmem>>, vector<28x144xbf16>
    %c0_51 = arith.constant 0 : index
    %c0_52 = arith.constant 0 : index
    %40 = vector.load %arg11[%c0_51, %c0_52] : memref<144x324xbf16, #tpu.memory_space<vmem>>, vector<144x324xbf16>
    %cst_53 = arith.constant dense<0.000000e+00> : vector<28x324xf32>
    %41 = tpu.matmul %39, %40, %cst_53 {dimension_numbers = #tpu.dot_dimension_numbers<[1], [0], [0], [1], [0, 0, 1, 1], [], []>} : vector<28x144xbf16>, vector<144x324xbf16>, vector<28x324xf32> -> vector<28x324xf32>
    %c0_54 = arith.constant 0 : index
    %c0_55 = arith.constant 0 : index
    %42 = vector.load %arg4[%c0_54, %c0_55] : memref<28x1xf32, #tpu.memory_space<vmem>>, vector<28x1xf32>
    %43 = vector.broadcast %42 : vector<28x1xf32> to vector<28x324xf32>
    %44 = arith.addf %41, %43 : vector<28x324xf32>
    %cst_56 = arith.constant 0.000000e+00 : f32
    %45 = vector.broadcast %cst_56 : f32 to vector<28x324xf32>
    %46 = arith.maximumf %44, %45 : vector<28x324xf32>
    %47 = vector.extract_strided_slice %46 {offsets = [16, 0], sizes = [12, 324], strides = [1, 1]} : vector<28x324xf32> to vector<12x324xf32>
    %48 = vector.broadcast %2 : vector<1x324xf32> to vector<12x324xf32>
    %49 = arith.mulf %47, %48 : vector<12x324xf32>
    %50 = arith.truncf %49 : vector<12x324xf32> to vector<12x324xbf16>
    %c0_57 = arith.constant 0 : index
    %c19_58 = arith.constant 19 : index
    %51 = vector.load %arg10[%c0_57, %c19_58] : memref<16x362xbf16, #tpu.memory_space<vmem>>, vector<12x324xbf16>
    tpu.vector_store %arg10[%c0_57, %c19_58], %50 {strides = array<i32>} : memref<16x362xbf16, #tpu.memory_space<vmem>>, vector<12x324xbf16>,
    %c0_59 = arith.constant 0 : index
    %c0_60 = arith.constant 0 : index
    %52 = vector.load %arg10[%c0_59, %c0_60] : memref<16x362xbf16, #tpu.memory_space<vmem>>, vector<16x324xbf16>
    %c0_61 = arith.constant 0 : index
    %c0_62 = arith.constant 0 : index
    %53 = vector.load %arg11[%c0_61, %c0_62] : memref<144x324xbf16, #tpu.memory_space<vmem>>, vector<16x324xbf16>
    tpu.vector_store %arg11[%c0_61, %c0_62], %52 {strides = array<i32>} : memref<144x324xbf16, #tpu.memory_space<vmem>>, vector<16x324xbf16>,
    %c0_63 = arith.constant 0 : index
    %c1_64 = arith.constant 1 : index
    %54 = vector.load %arg10[%c0_63, %c1_64] : memref<16x362xbf16, #tpu.memory_space<vmem>>, vector<16x324xbf16>
    %c16_65 = arith.constant 16 : index
    %c0_66 = arith.constant 0 : index
    %55 = vector.load %arg11[%c16_65, %c0_66] : memref<144x324xbf16, #tpu.memory_space<vmem>>, vector<16x324xbf16>
    tpu.vector_store %arg11[%c16_65, %c0_66], %54 {strides = array<i32>} : memref<144x324xbf16, #tpu.memory_space<vmem>>, vector<16x324xbf16>,
    %c0_67 = arith.constant 0 : index
    %c2_68 = arith.constant 2 : index
    %56 = vector.load %arg10[%c0_67, %c2_68] : memref<16x362xbf16, #tpu.memory_space<vmem>>, vector<16x324xbf16>
    %c32_69 = arith.constant 32 : index
    %c0_70 = arith.constant 0 : index
    %57 = vector.load %arg11[%c32_69, %c0_70] : memref<144x324xbf16, #tpu.memory_space<vmem>>, vector<16x324xbf16>
    tpu.vector_store %arg11[%c32_69, %c0_70], %56 {strides = array<i32>} : memref<144x324xbf16, #tpu.memory_space<vmem>>, vector<16x324xbf16>,
    %c0_71 = arith.constant 0 : index
    %c18_72 = arith.constant 18 : index
    %58 = vector.load %arg10[%c0_71, %c18_72] : memref<16x362xbf16, #tpu.memory_space<vmem>>, vector<16x324xbf16>
    %c48_73 = arith.constant 48 : index
    %c0_74 = arith.constant 0 : index
    %59 = vector.load %arg11[%c48_73, %c0_74] : memref<144x324xbf16, #tpu.memory_space<vmem>>, vector<16x324xbf16>
    tpu.vector_store %arg11[%c48_73, %c0_74], %58 {strides = array<i32>} : memref<144x324xbf16, #tpu.memory_space<vmem>>, vector<16x324xbf16>,
    %c0_75 = arith.constant 0 : index
    %c19_76 = arith.constant 19 : index
    %60 = vector.load %arg10[%c0_75, %c19_76] : memref<16x362xbf16, #tpu.memory_space<vmem>>, vector<16x324xbf16>
    %c64_77 = arith.constant 64 : index
    %c0_78 = arith.constant 0 : index
    %61 = vector.load %arg11[%c64_77, %c0_78] : memref<144x324xbf16, #tpu.memory_space<vmem>>, vector<16x324xbf16>
    tpu.vector_store %arg11[%c64_77, %c0_78], %60 {strides = array<i32>} : memref<144x324xbf16, #tpu.memory_space<vmem>>, vector<16x324xbf16>,
    %c0_79 = arith.constant 0 : index
    %c20_80 = arith.constant 20 : index
    %62 = vector.load %arg10[%c0_79, %c20_80] : memref<16x362xbf16, #tpu.memory_space<vmem>>, vector<16x324xbf16>
    %c80_81 = arith.constant 80 : index
    %c0_82 = arith.constant 0 : index
    %63 = vector.load %arg11[%c80_81, %c0_82] : memref<144x324xbf16, #tpu.memory_space<vmem>>, vector<16x324xbf16>
    tpu.vector_store %arg11[%c80_81, %c0_82], %62 {strides = array<i32>} : memref<144x324xbf16, #tpu.memory_space<vmem>>, vector<16x324xbf16>,
    %c0_83 = arith.constant 0 : index
    %c36_84 = arith.constant 36 : index
    %64 = vector.load %arg10[%c0_83, %c36_84] : memref<16x362xbf16, #tpu.memory_space<vmem>>, vector<16x324xbf16>
    %c96_85 = arith.constant 96 : index
    %c0_86 = arith.constant 0 : index
    %65 = vector.load %arg11[%c96_85, %c0_86] : memref<144x324xbf16, #tpu.memory_space<vmem>>, vector<16x324xbf16>
    tpu.vector_store %arg11[%c96_85, %c0_86], %64 {strides = array<i32>} : memref<144x324xbf16, #tpu.memory_space<vmem>>, vector<16x324xbf16>,
    %c0_87 = arith.constant 0 : index
    %c37_88 = arith.constant 37 : index
    %66 = vector.load %arg10[%c0_87, %c37_88] : memref<16x362xbf16, #tpu.memory_space<vmem>>, vector<16x324xbf16>
    %c112_89 = arith.constant 112 : index
    %c0_90 = arith.constant 0 : index
    %67 = vector.load %arg11[%c112_89, %c0_90] : memref<144x324xbf16, #tpu.memory_space<vmem>>, vector<16x324xbf16>
    tpu.vector_store %arg11[%c112_89, %c0_90], %66 {strides = array<i32>} : memref<144x324xbf16, #tpu.memory_space<vmem>>, vector<16x324xbf16>,
    %c0_91 = arith.constant 0 : index
    %c38_92 = arith.constant 38 : index
    %68 = vector.load %arg10[%c0_91, %c38_92] : memref<16x362xbf16, #tpu.memory_space<vmem>>, vector<16x324xbf16>
    %c128_93 = arith.constant 128 : index
    %c0_94 = arith.constant 0 : index
    %69 = vector.load %arg11[%c128_93, %c0_94] : memref<144x324xbf16, #tpu.memory_space<vmem>>, vector<16x324xbf16>
    tpu.vector_store %arg11[%c128_93, %c0_94], %68 {strides = array<i32>} : memref<144x324xbf16, #tpu.memory_space<vmem>>, vector<16x324xbf16>,
    %c0_95 = arith.constant 0 : index
    %c0_96 = arith.constant 0 : index
    %70 = vector.load %arg5[%c0_95, %c0_96] : memref<16x144xbf16, #tpu.memory_space<vmem>>, vector<16x144xbf16>
    %c0_97 = arith.constant 0 : index
    %c0_98 = arith.constant 0 : index
    %71 = vector.load %arg11[%c0_97, %c0_98] : memref<144x324xbf16, #tpu.memory_space<vmem>>, vector<144x324xbf16>
    %cst_99 = arith.constant dense<0.000000e+00> : vector<16x324xf32>
    %72 = tpu.matmul %70, %71, %cst_99 {dimension_numbers = #tpu.dot_dimension_numbers<[1], [0], [0], [1], [0, 0, 1, 1], [], []>} : vector<16x144xbf16>, vector<144x324xbf16>, vector<16x324xf32> -> vector<16x324xf32>
    %c0_100 = arith.constant 0 : index
    %c0_101 = arith.constant 0 : index
    %73 = vector.load %arg6[%c0_100, %c0_101] : memref<16x1xf32, #tpu.memory_space<vmem>>, vector<16x1xf32>
    %74 = vector.broadcast %73 : vector<16x1xf32> to vector<16x324xf32>
    %75 = arith.addf %72, %74 : vector<16x324xf32>
    %cst_102 = arith.constant 0.000000e+00 : f32
    %76 = vector.broadcast %cst_102 : f32 to vector<16x324xf32>
    %77 = arith.maximumf %75, %76 : vector<16x324xf32>
    %78 = vector.extract_strided_slice %77 {offsets = [8, 0], sizes = [8, 324], strides = [1, 1]} : vector<16x324xf32> to vector<8x324xf32>
    %79 = vector.broadcast %2 : vector<1x324xf32> to vector<8x324xf32>
    %80 = arith.mulf %78, %79 : vector<8x324xf32>
    %81 = arith.truncf %80 : vector<8x324xf32> to vector<8x324xbf16>
    %c0_103 = arith.constant 0 : index
    %c19_104 = arith.constant 19 : index
    %82 = vector.load %arg10[%c0_103, %c19_104] : memref<16x362xbf16, #tpu.memory_space<vmem>>, vector<8x324xbf16>
    tpu.vector_store %arg10[%c0_103, %c19_104], %81 {strides = array<i32>} : memref<16x362xbf16, #tpu.memory_space<vmem>>, vector<8x324xbf16>,
    %c0_105 = arith.constant 0 : index
    %c0_106 = arith.constant 0 : index
    %83 = vector.load %arg10[%c0_105, %c0_106] : memref<16x362xbf16, #tpu.memory_space<vmem>>, vector<16x324xbf16>
    %c0_107 = arith.constant 0 : index
    %c0_108 = arith.constant 0 : index
    %84 = vector.load %arg11[%c0_107, %c0_108] : memref<144x324xbf16, #tpu.memory_space<vmem>>, vector<16x324xbf16>
    tpu.vector_store %arg11[%c0_107, %c0_108], %83 {strides = array<i32>} : memref<144x324xbf16, #tpu.memory_space<vmem>>, vector<16x324xbf16>,
    %c0_109 = arith.constant 0 : index
    %c1_110 = arith.constant 1 : index
    %85 = vector.load %arg10[%c0_109, %c1_110] : memref<16x362xbf16, #tpu.memory_space<vmem>>, vector<16x324xbf16>
    %c16_111 = arith.constant 16 : index
    %c0_112 = arith.constant 0 : index
    %86 = vector.load %arg11[%c16_111, %c0_112] : memref<144x324xbf16, #tpu.memory_space<vmem>>, vector<16x324xbf16>
    tpu.vector_store %arg11[%c16_111, %c0_112], %85 {strides = array<i32>} : memref<144x324xbf16, #tpu.memory_space<vmem>>, vector<16x324xbf16>,
    %c0_113 = arith.constant 0 : index
    %c2_114 = arith.constant 2 : index
    %87 = vector.load %arg10[%c0_113, %c2_114] : memref<16x362xbf16, #tpu.memory_space<vmem>>, vector<16x324xbf16>
    %c32_115 = arith.constant 32 : index
    %c0_116 = arith.constant 0 : index
    %88 = vector.load %arg11[%c32_115, %c0_116] : memref<144x324xbf16, #tpu.memory_space<vmem>>, vector<16x324xbf16>
    tpu.vector_store %arg11[%c32_115, %c0_116], %87 {strides = array<i32>} : memref<144x324xbf16, #tpu.memory_space<vmem>>, vector<16x324xbf16>,
    %c0_117 = arith.constant 0 : index
    %c18_118 = arith.constant 18 : index
    %89 = vector.load %arg10[%c0_117, %c18_118] : memref<16x362xbf16, #tpu.memory_space<vmem>>, vector<16x324xbf16>
    %c48_119 = arith.constant 48 : index
    %c0_120 = arith.constant 0 : index
    %90 = vector.load %arg11[%c48_119, %c0_120] : memref<144x324xbf16, #tpu.memory_space<vmem>>, vector<16x324xbf16>
    tpu.vector_store %arg11[%c48_119, %c0_120], %89 {strides = array<i32>} : memref<144x324xbf16, #tpu.memory_space<vmem>>, vector<16x324xbf16>,
    %c0_121 = arith.constant 0 : index
    %c19_122 = arith.constant 19 : index
    %91 = vector.load %arg10[%c0_121, %c19_122] : memref<16x362xbf16, #tpu.memory_space<vmem>>, vector<16x324xbf16>
    %c64_123 = arith.constant 64 : index
    %c0_124 = arith.constant 0 : index
    %92 = vector.load %arg11[%c64_123, %c0_124] : memref<144x324xbf16, #tpu.memory_space<vmem>>, vector<16x324xbf16>
    tpu.vector_store %arg11[%c64_123, %c0_124], %91 {strides = array<i32>} : memref<144x324xbf16, #tpu.memory_space<vmem>>, vector<16x324xbf16>,
    %c0_125 = arith.constant 0 : index
    %c20_126 = arith.constant 20 : index
    %93 = vector.load %arg10[%c0_125, %c20_126] : memref<16x362xbf16, #tpu.memory_space<vmem>>, vector<16x324xbf16>
    %c80_127 = arith.constant 80 : index
    %c0_128 = arith.constant 0 : index
    %94 = vector.load %arg11[%c80_127, %c0_128] : memref<144x324xbf16, #tpu.memory_space<vmem>>, vector<16x324xbf16>
    tpu.vector_store %arg11[%c80_127, %c0_128], %93 {strides = array<i32>} : memref<144x324xbf16, #tpu.memory_space<vmem>>, vector<16x324xbf16>,
    %c0_129 = arith.constant 0 : index
    %c36_130 = arith.constant 36 : index
    %95 = vector.load %arg10[%c0_129, %c36_130] : memref<16x362xbf16, #tpu.memory_space<vmem>>, vector<16x324xbf16>
    %c96_131 = arith.constant 96 : index
    %c0_132 = arith.constant 0 : index
    %96 = vector.load %arg11[%c96_131, %c0_132] : memref<144x324xbf16, #tpu.memory_space<vmem>>, vector<16x324xbf16>
    tpu.vector_store %arg11[%c96_131, %c0_132], %95 {strides = array<i32>} : memref<144x324xbf16, #tpu.memory_space<vmem>>, vector<16x324xbf16>,
    %c0_133 = arith.constant 0 : index
    %c37_134 = arith.constant 37 : index
    %97 = vector.load %arg10[%c0_133, %c37_134] : memref<16x362xbf16, #tpu.memory_space<vmem>>, vector<16x324xbf16>
    %c112_135 = arith.constant 112 : index
    %c0_136 = arith.constant 0 : index
    %98 = vector.load %arg11[%c112_135, %c0_136] : memref<144x324xbf16, #tpu.memory_space<vmem>>, vector<16x324xbf16>
    tpu.vector_store %arg11[%c112_135, %c0_136], %97 {strides = array<i32>} : memref<144x324xbf16, #tpu.memory_space<vmem>>, vector<16x324xbf16>,
    %c0_137 = arith.constant 0 : index
    %c38_138 = arith.constant 38 : index
    %99 = vector.load %arg10[%c0_137, %c38_138] : memref<16x362xbf16, #tpu.memory_space<vmem>>, vector<16x324xbf16>
    %c128_139 = arith.constant 128 : index
    %c0_140 = arith.constant 0 : index
    %100 = vector.load %arg11[%c128_139, %c0_140] : memref<144x324xbf16, #tpu.memory_space<vmem>>, vector<16x324xbf16>
    tpu.vector_store %arg11[%c128_139, %c0_140], %99 {strides = array<i32>} : memref<144x324xbf16, #tpu.memory_space<vmem>>, vector<16x324xbf16>,
    %c0_141 = arith.constant 0 : index
    %c0_142 = arith.constant 0 : index
    %101 = vector.load %arg7[%c0_141, %c0_142] : memref<8x144xbf16, #tpu.memory_space<vmem>>, vector<8x144xbf16>
    %c0_143 = arith.constant 0 : index
    %c0_144 = arith.constant 0 : index
    %102 = vector.load %arg11[%c0_143, %c0_144] : memref<144x324xbf16, #tpu.memory_space<vmem>>, vector<144x324xbf16>
    %cst_145 = arith.constant dense<0.000000e+00> : vector<8x324xf32>
    %103 = tpu.matmul %101, %102, %cst_145 {dimension_numbers = #tpu.dot_dimension_numbers<[1], [0], [0], [1], [0, 0, 1, 1], [], []>} : vector<8x144xbf16>, vector<144x324xbf16>, vector<8x324xf32> -> vector<8x324xf32>
    %c0_146 = arith.constant 0 : index
    %c0_147 = arith.constant 0 : index
    %104 = vector.load %arg8[%c0_146, %c0_147] : memref<8x1xf32, #tpu.memory_space<vmem>>, vector<8x1xf32>
    %105 = vector.broadcast %104 : vector<8x1xf32> to vector<8x324xf32>
    %106 = arith.addf %103, %105 : vector<8x324xf32>
    %cst_148 = arith.constant 0.000000e+00 : f32
    %107 = vector.broadcast %cst_148 : f32 to vector<8x324xf32>
    %108 = arith.maximumf %106, %107 : vector<8x324xf32>
    %109 = vector.extract_strided_slice %46 {offsets = [0, 0], sizes = [8, 324], strides = [1, 1]} : vector<28x324xf32> to vector<8x324xf32>
    %c0_149 = arith.constant 0 : index
    %c0_150 = arith.constant 0 : index
    %c0_151 = arith.constant 0 : index
    %110 = vector.load %arg9[%c0_149, %c0_150, %c0_151] : memref<1x32x324xf32, #tpu.memory_space<vmem>>, vector<1x8x324xf32>
    %111 = vector.shape_cast %110 : vector<1x8x324xf32> to vector<8x324xf32>
    %112 = vector.shape_cast %109 : vector<8x324xf32> to vector<1x8x324xf32>
    tpu.vector_store %arg9[%c0_149, %c0_150, %c0_151], %112 {strides = array<i32>} : memref<1x32x324xf32, #tpu.memory_space<vmem>>, vector<1x8x324xf32>,
    %113 = vector.extract_strided_slice %77 {offsets = [0, 0], sizes = [8, 324], strides = [1, 1]} : vector<16x324xf32> to vector<8x324xf32>
    %c0_152 = arith.constant 0 : index
    %c8 = arith.constant 8 : index
    %c0_153 = arith.constant 0 : index
    %114 = vector.load %arg9[%c0_152, %c8, %c0_153] : memref<1x32x324xf32, #tpu.memory_space<vmem>>, vector<1x8x324xf32>
    %115 = vector.shape_cast %114 : vector<1x8x324xf32> to vector<8x324xf32>
    %116 = vector.shape_cast %113 : vector<8x324xf32> to vector<1x8x324xf32>
    tpu.vector_store %arg9[%c0_152, %c8, %c0_153], %116 {strides = array<i32>} : memref<1x32x324xf32, #tpu.memory_space<vmem>>, vector<1x8x324xf32>,
    %c0_154 = arith.constant 0 : index
    %c16_155 = arith.constant 16 : index
    %c0_156 = arith.constant 0 : index
    %117 = vector.load %arg9[%c0_154, %c16_155, %c0_156] : memref<1x32x324xf32, #tpu.memory_space<vmem>>, vector<1x8x324xf32>
    %118 = vector.shape_cast %117 : vector<1x8x324xf32> to vector<8x324xf32>
    %119 = vector.shape_cast %108 : vector<8x324xf32> to vector<1x8x324xf32>
    tpu.vector_store %arg9[%c0_154, %c16_155, %c0_156], %119 {strides = array<i32>} : memref<1x32x324xf32, #tpu.memory_space<vmem>>, vector<1x8x324xf32>,
    %120 = vector.extract_strided_slice %46 {offsets = [8, 0], sizes = [8, 324], strides = [1, 1]} : vector<28x324xf32> to vector<8x324xf32>
    %c0_157 = arith.constant 0 : index
    %c24 = arith.constant 24 : index
    %c0_158 = arith.constant 0 : index
    %121 = vector.load %arg9[%c0_157, %c24, %c0_158] : memref<1x32x324xf32, #tpu.memory_space<vmem>>, vector<1x8x324xf32>
    %122 = vector.shape_cast %121 : vector<1x8x324xf32> to vector<8x324xf32>
    %123 = vector.shape_cast %120 : vector<8x324xf32> to vector<1x8x324xf32>
    tpu.vector_store %arg9[%c0_157, %c24, %c0_158], %123 {strides = array<i32>} : memref<1x32x324xf32, #tpu.memory_space<vmem>>, vector<1x8x324xf32>,
    return
  }
  func.func @transform_0(%arg0: i32) -> (i32, i32, i32) {
    %c0_i32 = arith.constant 0 : i32
    %c0_i32_0 = arith.constant 0 : i32
    %c0_i32_1 = arith.constant 0 : i32
    return %arg0, %c0_i32, %c0_i32_0 : i32, i32, i32
  }
  func.func @transform_1(%arg0: i32) -> (i32, i32) {
    %c0_i32 = arith.constant 0 : i32
    %c0_i32_0 = arith.constant 0 : i32
    %c0_i32_1 = arith.constant 0 : i32
    return %c0_i32, %c0_i32_0 : i32, i32
  }
  func.func @transform_2(%arg0: i32) -> (i32, i32) {
    %c0_i32 = arith.constant 0 : i32
    %c0_i32_0 = arith.constant 0 : i32
    %c0_i32_1 = arith.constant 0 : i32
    return %c0_i32, %c0_i32_0 : i32, i32
  }
  func.func @transform_3(%arg0: i32) -> (i32, i32) {
    %c0_i32 = arith.constant 0 : i32
    %c0_i32_0 = arith.constant 0 : i32
    %c0_i32_1 = arith.constant 0 : i32
    return %c0_i32, %c0_i32_0 : i32, i32
  }
  func.func @transform_4(%arg0: i32) -> (i32, i32) {
    %c0_i32 = arith.constant 0 : i32
    %c0_i32_0 = arith.constant 0 : i32
    %c0_i32_1 = arith.constant 0 : i32
    return %c0_i32, %c0_i32_0 : i32, i32
  }
  func.func @transform_5(%arg0: i32) -> (i32, i32) {
    %c0_i32 = arith.constant 0 : i32
    %c0_i32_0 = arith.constant 0 : i32
    %c0_i32_1 = arith.constant 0 : i32
    return %c0_i32, %c0_i32_0 : i32, i32
  }
  func.func @transform_6(%arg0: i32) -> (i32, i32) {
    %c0_i32 = arith.constant 0 : i32
    %c0_i32_0 = arith.constant 0 : i32
    %c0_i32_1 = arith.constant 0 : i32
    return %c0_i32, %c0_i32_0 : i32, i32
  }
  func.func @transform_7(%arg0: i32) -> (i32, i32) {
    %c0_i32 = arith.constant 0 : i32
    %c0_i32_0 = arith.constant 0 : i32
    %c0_i32_1 = arith.constant 0 : i32
    return %c0_i32, %c0_i32_0 : i32, i32
  }
  func.func @transform_8(%arg0: i32) -> (i32, i32, i32) {
    %c0_i32 = arith.constant 0 : i32
    %c0_i32_0 = arith.constant 0 : i32
    %c0_i32_1 = arith.constant 0 : i32
    return %arg0, %c0_i32, %c0_i32_0 : i32, i32, i32
  }
}

</mosaic_0001>

<llo_original>
// kernel: inception_block_v4.1
$region0: #{inception_block_v4.1}
  #allocation0 [shape = 'u32[]', space=smem, size = 0x4, offset = 0x4, fixed_abs, tag = 'smem constant byte address 0x4 - core index']
  #allocation1 [shape = 'u32[144,128]{1,0:T(1,128)}', space=vmem, size = 0x12000, scoped, tag = 'internal scratch']
  #allocation2 [shape = 'bf16[16,362]{1,0:T(8,128)(2,1)}', space=vmem, size = 0x3000, scoped, tag = 'scratch operand']
  #allocation3 [shape = 'bf16[144,324]{1,0:T(8,128)(2,1)}', space=vmem, size = 0x1b000, scoped, tag = 'scratch operand']
  %s0 = inlined_call_operand.vmem [shape: bf16[2,16,362], index: 0, kind: input, shape index: {}]
  %s1 = inlined_call_operand.vmem [shape: f32[1,324], index: 1, kind: input, shape index: {}]
  %s2 = inlined_call_operand.vmem [shape: bf16[28,144], index: 2, kind: input, shape index: {}]
  %s3 = inlined_call_operand.vmem [shape: f32[28,1], index: 3, kind: input, shape index: {}]
  %s4 = inlined_call_operand.vmem [shape: bf16[16,144], index: 4, kind: input, shape index: {}]
  %s5 = inlined_call_operand.vmem [shape: f32[16,1], index: 5, kind: input, shape index: {}]
  %s6 = inlined_call_operand.vmem [shape: bf16[8,144], index: 6, kind: input, shape index: {}]
  %s7 = inlined_call_operand.vmem [shape: f32[8,1], index: 7, kind: input, shape index: {}]
  %s8 = inlined_call_operand.vmem [shape: f32[2,32,324], index: 8, kind: output, shape index: {}]
  %s9 = sld [smem:[#allocation0]]
  $region65: #{inception_block_v4.1} parent=0
    _
  %s11 = ssub.s32 1, %s9
  %s12 = scalar_select 0, %s11, %s9
  loop: start=0, step=1, limit=4
  $region2: #{inception_block_v4.1} parent=0 // loop_pre_header
    _
  $region3: #{inception_block_v4.1} parent=0 // loop_header
    %s14 = sphi 0, %s18
    %p15 = scmp.ge.s32.totalorder %s14, 4
    %s24 = sphi 0, %s26
    %s27 = sphi 0, %s24
    %s28 = sphi 0, %s27
    %s44 = sphi 0, %s28
    %s48 = sphi 0, %s48
    %s50 = sphi 0, %s48
    %s51 = sphi 0, %s50
    %s65 = sphi 0, %s51
    %s69 = sphi 0, %s69
    %s71 = sphi 0, %s69
    %s72 = sphi 0, %s71
    %s86 = sphi 0, %s72
    %s90 = sphi 0, %s90
    %s92 = sphi 0, %s90
    %s93 = sphi 0, %s92
    %s107 = sphi 0, %s93
    %s111 = sphi 0, %s111
    %s113 = sphi 0, %s111
    %s114 = sphi 0, %s113
    %s128 = sphi 0, %s114
    %s132 = sphi 0, %s132
    %s134 = sphi 0, %s132
    %s135 = sphi 0, %s134
    %s149 = sphi 0, %s135
    %s153 = sphi 0, %s153
    %s155 = sphi 0, %s153
    %s156 = sphi 0, %s155
    %s170 = sphi 0, %s156
    %s174 = sphi 0, %s174
    %s176 = sphi 0, %s174
    %s177 = sphi 0, %s176
    %s191 = sphi 0, %s177
    %s197 = sphi 0, %s199
    %s200 = sphi 0, %s197
    %s201 = sphi 0, %s200
    %s217 = sphi 0, %s201
  $region4: #{inception_block_v4.1} parent=0 // loop_header_branch
    %17 = sbr.rel (%p15) target = $region8
  $region5: #{inception_block_v4.1} parent=0 // loop_body
    %s19 = ssub.s32 %s14, 1
    %s20 = ssub.s32 %s14, 2
    %s21 = sadd.s32 %s14, 1
    %s22 = ssub.s32 %s14, %s21
    %p23 = scmp.eq.s32.totalorder %s22, 0
    %s25 = sadd.s32 %s24, 1
    %s26 = scalar_select %p23, %s24, %s25
    %p29 = pneg %p23
    %p30 = scmp.eq.s32.totalorder %s14, 1
    %p31 = por %p29, %p30
    %p32 = scmp.ne.s32.totalorder %s24, %s27
    %p33 = scmp.eq.s32.totalorder %s14, 0
    %p34 = por %p32, %p33
    %p35 = scmp.ne.s32.totalorder %s24, %s27
    %p36 = scmp.eq.s32.totalorder %s19, 1
    %p37 = por %p35, %p36
    %p38 = scmp.ne.s32.totalorder %s27, %s28
    %p39 = scmp.eq.s32.totalorder %s19, 0
    %p40 = por %p38, %p39
    %p41 = scmp.ne.s32.totalorder %s27, %s28
    %p42 = scmp.eq.s32.totalorder %s20, 1
    %p43 = por %p41, %p42
    %p45 = scmp.ne.s32.totalorder %s28, %s44
    %p46 = scmp.eq.s32.totalorder %s20, 0
    %p47 = por %p45, %p46
    %s49 = sadd.s32 %s48, 1
    %p52 = scmp.eq.s32.totalorder %s14, 1
    %p53 = scmp.ne.s32.totalorder %s48, %s50
    %p54 = scmp.eq.s32.totalorder %s14, 0
    %p55 = por %p53, %p54
    %p56 = scmp.ne.s32.totalorder %s48, %s50
    %p57 = scmp.eq.s32.totalorder %s19, 1
    %p58 = por %p56, %p57
    %p59 = scmp.ne.s32.totalorder %s50, %s51
    %p60 = scmp.eq.s32.totalorder %s19, 0
    %p61 = por %p59, %p60
    %p62 = scmp.ne.s32.totalorder %s50, %s51
    %p63 = scmp.eq.s32.totalorder %s20, 1
    %p64 = por %p62, %p63
    %p66 = scmp.ne.s32.totalorder %s51, %s65
    %p67 = scmp.eq.s32.totalorder %s20, 0
    %p68 = por %p66, %p67
    %s70 = sadd.s32 %s69, 1
    %p73 = scmp.eq.s32.totalorder %s14, 1
    %p74 = scmp.ne.s32.totalorder %s69, %s71
    %p75 = scmp.eq.s32.totalorder %s14, 0
    %p76 = por %p74, %p75
    %p77 = scmp.ne.s32.totalorder %s69, %s71
    %p78 = scmp.eq.s32.totalorder %s19, 1
    %p79 = por %p77, %p78
    %p80 = scmp.ne.s32.totalorder %s71, %s72
    %p81 = scmp.eq.s32.totalorder %s19, 0
    %p82 = por %p80, %p81
    %p83 = scmp.ne.s32.totalorder %s71, %s72
    %p84 = scmp.eq.s32.totalorder %s20, 1
    %p85 = por %p83, %p84
    %p87 = scmp.ne.s32.totalorder %s72, %s86
    %p88 = scmp.eq.s32.totalorder %s20, 0
    %p89 = por %p87, %p88
    %s91 = sadd.s32 %s90, 1
    %p94 = scmp.eq.s32.totalorder %s14, 1
    %p95 = scmp.ne.s32.totalorder %s90, %s92
    %p96 = scmp.eq.s32.totalorder %s14, 0
    %p97 = por %p95, %p96
    %p98 = scmp.ne.s32.totalorder %s90, %s92
    %p99 = scmp.eq.s32.totalorder %s19, 1
    %p100 = por %p98, %p99
    %p101 = scmp.ne.s32.totalorder %s92, %s93
    %p102 = scmp.eq.s32.totalorder %s19, 0
    %p103 = por %p101, %p102
    %p104 = scmp.ne.s32.totalorder %s92, %s93
    %p105 = scmp.eq.s32.totalorder %s20, 1
    %p106 = por %p104, %p105
    %p108 = scmp.ne.s32.totalorder %s93, %s107
    %p109 = scmp.eq.s32.totalorder %s20, 0
    %p110 = por %p108, %p109
    %s112 = sadd.s32 %s111, 1
    %p115 = scmp.eq.s32.totalorder %s14, 1
    %p116 = scmp.ne.s32.totalorder %s111, %s113
    %p117 = scmp.eq.s32.totalorder %s14, 0
    %p118 = por %p116, %p117
    %p119 = scmp.ne.s32.totalorder %s111, %s113
    %p120 = scmp.eq.s32.totalorder %s19, 1
    %p121 = por %p119, %p120
    %p122 = scmp.ne.s32.totalorder %s113, %s114
    %p123 = scmp.eq.s32.totalorder %s19, 0
    %p124 = por %p122, %p123
    %p125 = scmp.ne.s32.totalorder %s113, %s114
    %p126 = scmp.eq.s32.totalorder %s20, 1
    %p127 = por %p125, %p126
    %p129 = scmp.ne.s32.totalorder %s114, %s128
    %p130 = scmp.eq.s32.totalorder %s20, 0
    %p131 = por %p129, %p130
    %s133 = sadd.s32 %s132, 1
    %p136 = scmp.eq.s32.totalorder %s14, 1
    %p137 = scmp.ne.s32.totalorder %s132, %s134
    %p138 = scmp.eq.s32.totalorder %s14, 0
    %p139 = por %p137, %p138
    %p140 = scmp.ne.s32.totalorder %s132, %s134
    %p141 = scmp.eq.s32.totalorder %s19, 1
    %p142 = por %p140, %p141
    %p143 = scmp.ne.s32.totalorder %s134, %s135
    %p144 = scmp.eq.s32.totalorder %s19, 0
    %p145 = por %p143, %p144
    %p146 = scmp.ne.s32.totalorder %s134, %s135
    %p147 = scmp.eq.s32.totalorder %s20, 1
    %p148 = por %p146, %p147
    %p150 = scmp.ne.s32.totalorder %s135, %s149
    %p151 = scmp.eq.s32.totalorder %s20, 0
    %p152 = por %p150, %p151
    %s154 = sadd.s32 %s153, 1
    %p157 = scmp.eq.s32.totalorder %s14, 1
    %p158 = scmp.ne.s32.totalorder %s153, %s155
    %p159 = scmp.eq.s32.totalorder %s14, 0
    %p160 = por %p158, %p159
    %p161 = scmp.ne.s32.totalorder %s153, %s155
    %p162 = scmp.eq.s32.totalorder %s19, 1
    %p163 = por %p161, %p162
    %p164 = scmp.ne.s32.totalorder %s155, %s156
    %p165 = scmp.eq.s32.totalorder %s19, 0
    %p166 = por %p164, %p165
    %p167 = scmp.ne.s32.totalorder %s155, %s156
    %p168 = scmp.eq.s32.totalorder %s20, 1
    %p169 = por %p167, %p168
    %p171 = scmp.ne.s32.totalorder %s156, %s170
    %p172 = scmp.eq.s32.totalorder %s20, 0
    %p173 = por %p171, %p172
    %s175 = sadd.s32 %s174, 1
    %p178 = scmp.eq.s32.totalorder %s14, 1
    %p179 = scmp.ne.s32.totalorder %s174, %s176
    %p180 = scmp.eq.s32.totalorder %s14, 0
    %p181 = por %p179, %p180
    %p182 = scmp.ne.s32.totalorder %s174, %s176
    %p183 = scmp.eq.s32.totalorder %s19, 1
    %p184 = por %p182, %p183
    %p185 = scmp.ne.s32.totalorder %s176, %s177
    %p186 = scmp.eq.s32.totalorder %s19, 0
    %p187 = por %p185, %p186
    %p188 = scmp.ne.s32.totalorder %s176, %s177
    %p189 = scmp.eq.s32.totalorder %s20, 1
    %p190 = por %p188, %p189
    %p192 = scmp.ne.s32.totalorder %s177, %s191
    %p193 = scmp.eq.s32.totalorder %s20, 0
    %p194 = por %p192, %p193
    %s195 = ssub.s32 %s14, %s21
    %p196 = scmp.eq.s32.totalorder %s195, 0
    %s198 = sadd.s32 %s197, 1
    %s199 = scalar_select %p196, %s197, %s198
    %p202 = pneg %p196
    %p203 = scmp.eq.s32.totalorder %s14, 1
    %p204 = por %p202, %p203
    %p205 = scmp.ne.s32.totalorder %s197, %s200
    %p206 = scmp.eq.s32.totalorder %s14, 0
    %p207 = por %p205, %p206
    %p208 = scmp.ne.s32.totalorder %s197, %s200
    %p209 = scmp.eq.s32.totalorder %s19, 1
    %p210 = por %p208, %p209
    %p211 = scmp.ne.s32.totalorder %s200, %s201
    %p212 = scmp.eq.s32.totalorder %s19, 0
    %p213 = por %p211, %p212
    %p214 = scmp.ne.s32.totalorder %s200, %s201
    %p215 = scmp.eq.s32.totalorder %s20, 1
    %p216 = por %p214, %p215
    %p218 = scmp.ne.s32.totalorder %s201, %s217
    %p219 = scmp.eq.s32.totalorder %s20, 0
    %p220 = por %p218, %p219
    %p221 = scmp.le.s32.totalorder 1, %s14
    %p222 = scmp.lt.s32.totalorder %s14, 3
    %p223 = pnand %p221, %p222
    %p224 = pneg %p223
    // Predicated region
    $region9: #{inception_block_v4.1} parent=5 // pred_check
      _
    $region10: #{inception_block_v4.1} parent=5 // pred_check_branch
      %226 = sbr.rel (%p223) target = $region12
    $region11: #{inception_block_v4.1} parent=5 // pred_region
      %s227 = ssub.s32 %s14, 1
      // Predicated region
      $region13: #{inception_block_v4.1} parent=11 // pred_check
        %p228 = pneg %p61
      $region14: #{inception_block_v4.1} parent=11 // pred_check_branch
        %230 = sbr.rel (%p228) target = $region16
      $region15: #{inception_block_v4.1} parent=11 // pred_region
        _
      $region16: #{inception_block_v4.1} parent=11 // pred_fallthru
        _
      // Predicated region
      $region17: #{inception_block_v4.1} parent=11 // pred_check
        %p231 = pneg %p82
      $region18: #{inception_block_v4.1} parent=11 // pred_check_branch
        %233 = sbr.rel (%p231) target = $region20
      $region19: #{inception_block_v4.1} parent=11 // pred_region
        _
      $region20: #{inception_block_v4.1} parent=11 // pred_fallthru
        _
      // Predicated region
      $region21: #{inception_block_v4.1} parent=11 // pred_check
        %p234 = pneg %p103
      $region22: #{inception_block_v4.1} parent=11 // pred_check_branch
        %236 = sbr.rel (%p234) target = $region24
      $region23: #{inception_block_v4.1} parent=11 // pred_region
        _
      $region24: #{inception_block_v4.1} parent=11 // pred_fallthru
        _
      // Predicated region
      $region25: #{inception_block_v4.1} parent=11 // pred_check
        %p237 = pneg %p124
      $region26: #{inception_block_v4.1} parent=11 // pred_check_branch
        %239 = sbr.rel (%p237) target = $region28
      $region27: #{inception_block_v4.1} parent=11 // pred_region
        _
      $region28: #{inception_block_v4.1} parent=11 // pred_fallthru
        _
      // Predicated region
      $region29: #{inception_block_v4.1} parent=11 // pred_check
        %p240 = pneg %p145
      $region30: #{inception_block_v4.1} parent=11 // pred_check_branch
        %242 = sbr.rel (%p240) target = $region32
      $region31: #{inception_block_v4.1} parent=11 // pred_region
        _
      $region32: #{inception_block_v4.1} parent=11 // pred_fallthru
        _
      // Predicated region
      $region33: #{inception_block_v4.1} parent=11 // pred_check
        %p243 = pneg %p166
      $region34: #{inception_block_v4.1} parent=11 // pred_check_branch
        %245 = sbr.rel (%p243) target = $region36
      $region35: #{inception_block_v4.1} parent=11 // pred_region
        _
      $region36: #{inception_block_v4.1} parent=11 // pred_fallthru
        _
      // Predicated region
      $region37: #{inception_block_v4.1} parent=11 // pred_check
        %p246 = pneg %p187
      $region38: #{inception_block_v4.1} parent=11 // pred_check_branch
        %248 = sbr.rel (%p246) target = $region40
      $region39: #{inception_block_v4.1} parent=11 // pred_region
        _
      $region40: #{inception_block_v4.1} parent=11 // pred_fallthru
        _
    $region12: #{inception_block_v4.1} parent=5 // pred_fallthru
      _
    %p249 = scmp.lt.s32.totalorder %s14, 2
    // Predicated region
    $region41: #{inception_block_v4.1} parent=5 // pred_check
      %p250 = pneg %p249
    $region42: #{inception_block_v4.1} parent=5 // pred_check_branch
      %252 = sbr.rel (%p250) target = $region44
    $region43: #{inception_block_v4.1} parent=5 // pred_region
      // Predicated region
      $region45: #{inception_block_v4.1} parent=43 // pred_check
        %p253 = pneg %p34
      $region46: #{inception_block_v4.1} parent=43 // pred_check_branch
        %255 = sbr.rel (%p253) target = $region48
      $region47: #{inception_block_v4.1} parent=43 // pred_region
        %p256 = scmp.lt.s32.totalorder %s14, 1
        %s257 = scalar_select %p256, %s14, 1
        %s258 = smul.addr %s257, 6
        %s259 = smul.addr %s258, 4
        %s260 = scalar_lea.vmem %s0, %s259
      $region48: #{inception_block_v4.1} parent=43 // pred_fallthru
        _
    $region44: #{inception_block_v4.1} parent=5 // pred_fallthru
      _
    %p261 = scmp.le.s32.totalorder 1, %s14
    %p262 = scmp.lt.s32.totalorder %s14, 3
    %p263 = pnand %p261, %p262
    %p264 = pneg %p263
    // Predicated region
    $region49: #{inception_block_v4.1} parent=5 // pred_check
      _
    $region50: #{inception_block_v4.1} parent=5 // pred_check_branch
      %266 = sbr.rel (%p263) target = $region52
    $region51: #{inception_block_v4.1} parent=5 // pred_region
      %s267 = ssub.s32 %s14, 1
      %p268 = scmp.lt.s32.totalorder %s19, 1
      %s269 = scalar_select %p268, %s19, 1
      %s270 = smul.addr %s269, 6
      %s271 = smul.addr %s270, 4
      %s272 = scalar_lea.vmem %s0, %s271
      %p273 = pneg %p40
      %p274 = pneg %p37
      %p275 = pneg %p61
      %p276 = pneg %p58
      %p277 = pneg %p82
      %p278 = pneg %p79
      %p279 = pneg %p103
      %p280 = pneg %p100
      %p281 = pneg %p124
      %p282 = pneg %p121
      %p283 = pneg %p145
      %p284 = pneg %p142
      %p285 = pneg %p166
      %p286 = pneg %p163
      %p287 = pneg %p187
      %p288 = pneg %p184
      %p289 = pneg %p213
      %p290 = pneg %p210
      %p291 = scmp.lt.s32.totalorder %s19, 1
      %s292 = scalar_select %p291, %s19, 1
      %s293 = smul.addr %s292, 12
      %s294 = smul.addr %s293, 8
      %s295 = scalar_lea.vmem %s8, %s294
      %p296 = scmp.lt.s32.totalorder %s19, 1
      %s297 = scalar_select %p296, %s19, 1
      %s298 = smul.addr %s297, 6
      %s299 = smul.addr %s298, 4
      %s300 = scalar_lea.vmem %s0, %s299
      %p301 = scmp.lt.s32.totalorder %s19, 1
      %s302 = scalar_select %p301, %s19, 1
      %s303 = smul.addr %s302, 12
      %s304 = smul.addr %s303, 8
      %s305 = scalar_lea.vmem %s8, %s304
      %307 = vst [vmem:[#allocation2] sm:$0xff] 0
      %vm308 = vcmask 863232
      %309 = vst.msk [vmem:[#allocation2 + $0x8] sm:$0xf] %vm308, 0
      %310 = vst [vmem:[#allocation2 + $0xc] sm:$0xff] 0
      %311 = vst.msk [vmem:[#allocation2 + $0x14] sm:$0xf] %vm308, 0
      %v312 = vld [vmem:[%s1] sm:$0x7]
      %v313 = vld [vmem:[%s300] sm:$0xff]
      %v314 = vld [vmem:[%s300 + $0x8] sm:$0xf]
      %v315 = vld [vmem:[%s300 + $0xc] sm:$0xff]
      %v316 = vld [vmem:[%s300 + $0x14] sm:$0xf]
      %317 = vst [vmem:[#allocation3] sm:$0xff] %v313
      %vm318 = vcmask 551936
      %319 = vst.msk [vmem:[#allocation3 + $0x8] sm:$0xf] %vm318, %v314
      %320 = vst [vmem:[#allocation3 + $0xc] sm:$0xff] %v315
      %321 = vst.msk [vmem:[#allocation3 + $0x14] sm:$0xf] %vm318, %v316
      %v322 = vld [vmem:[%s300] sm:$0xff]
      %v323 = vld [vmem:[%s300 + $0x8] sm:$0xf]
      %v324 = vld [vmem:[%s300 + $0xc] sm:$0xff]
      %v325 = vld [vmem:[%s300 + $0x14] sm:$0xf]
      %330 = vrot.lane.b32.xlu0 %v322, 127
      %v331 = vpop.permute.xlu0 %330
      %332 = vrot.lane.b32.xlu0 %v323, 127
      %v333 = vpop.permute.xlu0 %332
      %334 = vrot.lane.b32.xlu0 %v324, 127
      %v335 = vpop.permute.xlu0 %334
      %336 = vrot.lane.b32.xlu0 %v325, 127
      %v337 = vpop.permute.xlu0 %336
      %v338 = vrot.slane %v331, 4
      %v339 = vrot.slane %v333, 4
      %v340 = vrot.slane %v335, 4
      %v341 = vrot.slane %v337, 4
      %vm342 = vcmask 1043456
      %v343 = vsel %vm342, %v338, %v339
      %vm344 = vcmask 1039360
      %v345 = vsel %vm344, %v331, %v343
      %v346 = vsel %vm342, %v340, %v341
      %v347 = vsel %vm344, %v335, %v346
      %352 = vst [vmem:[#allocation3 + $0x18] sm:$0xff] %v345
      %353 = vst.msk [vmem:[#allocation3 + $0x20] sm:$0xf] %vm318, %v333
      %354 = vst [vmem:[#allocation3 + $0x24] sm:$0xff] %v347
      %355 = vst.msk [vmem:[#allocation3 + $0x2c] sm:$0xf] %vm318, %v337
      %v356 = vld [vmem:[%s300] sm:$0xff]
      %v357 = vld [vmem:[%s300 + $0x8] sm:$0xf]
      %v358 = vld [vmem:[%s300 + $0xc] sm:$0xff]
      %v359 = vld [vmem:[%s300 + $0x14] sm:$0xf]
      %364 = vrot.lane.b32.xlu0 %v356, 126
      %v365 = vpop.permute.xlu0 %364
      %366 = vrot.lane.b32.xlu0 %v357, 126
      %v367 = vpop.permute.xlu0 %366
      %368 = vrot.lane.b32.xlu0 %v358, 126
      %v369 = vpop.permute.xlu0 %368
      %370 = vrot.lane.b32.xlu0 %v359, 126
      %v371 = vpop.permute.xlu0 %370
      %v372 = vrot.slane %v365, 4
      %v373 = vrot.slane %v367, 4
      %v374 = vrot.slane %v369, 4
      %v375 = vrot.slane %v371, 4
      %v376 = vsel %vm342, %v372, %v373
      %vm377 = vcmask 1031168
      %v378 = vsel %vm377, %v365, %v376
      %v379 = vsel %vm342, %v374, %v375
      %v380 = vsel %vm377, %v369, %v379
      %385 = vst [vmem:[#allocation3 + $0x30] sm:$0xff] %v378
      %386 = vst.msk [vmem:[#allocation3 + $0x38] sm:$0xf] %vm318, %v367
      %387 = vst [vmem:[#allocation3 + $0x3c] sm:$0xff] %v380
      %388 = vst.msk [vmem:[#allocation3 + $0x44] sm:$0xf] %vm318, %v371
      %v389 = vld [vmem:[%s300] sm:$0xff]
      %v390 = vld [vmem:[%s300 + $0x8] sm:$0xf]
      %v391 = vld [vmem:[%s300 + $0xc] sm:$0xff]
      %v392 = vld [vmem:[%s300 + $0x14] sm:$0xf]
      %397 = vrot.lane.b32.xlu0 %v389, 110
      %v398 = vpop.permute.xlu0 %397
      %399 = vrot.lane.b32.xlu0 %v390, 110
      %v400 = vpop.permute.xlu0 %399
      %401 = vrot.lane.b32.xlu0 %v391, 110
      %v402 = vpop.permute.xlu0 %401
      %403 = vrot.lane.b32.xlu0 %v392, 110
      %v404 = vpop.permute.xlu0 %403
      %v405 = vrot.slane %v398, 4
      %v406 = vrot.slane %v400, 4
      %v407 = vrot.slane %v402, 4
      %v408 = vrot.slane %v404, 4
      %v409 = vsel %vm342, %v405, %v406
      %vm410 = vcmask 900096
      %v411 = vsel %vm410, %v398, %v409
      %v412 = vsel %vm342, %v407, %v408
      %v413 = vsel %vm410, %v402, %v412
      %418 = vst [vmem:[#allocation3 + $0x48] sm:$0xff] %v411
      %419 = vst.msk [vmem:[#allocation3 + $0x50] sm:$0xf] %vm318, %v400
      %420 = vst [vmem:[#allocation3 + $0x54] sm:$0xff] %v413
      %421 = vst.msk [vmem:[#allocation3 + $0x5c] sm:$0xf] %vm318, %v404
      %v422 = vld [vmem:[%s300] sm:$0xff]
      %v423 = vld [vmem:[%s300 + $0x8] sm:$0xf]
      %v424 = vld [vmem:[%s300 + $0xc] sm:$0xff]
      %v425 = vld [vmem:[%s300 + $0x14] sm:$0xf]
      %430 = vrot.lane.b32.xlu0 %v422, 109
      %v431 = vpop.permute.xlu0 %430
      %432 = vrot.lane.b32.xlu0 %v423, 109
      %v433 = vpop.permute.xlu0 %432
      %434 = vrot.lane.b32.xlu0 %v424, 109
      %v435 = vpop.permute.xlu0 %434
      %436 = vrot.lane.b32.xlu0 %v425, 109
      %v437 = vpop.permute.xlu0 %436
      %v438 = vrot.slane %v431, 4
      %v439 = vrot.slane %v433, 4
      %v440 = vrot.slane %v435, 4
      %v441 = vrot.slane %v437, 4
      %v442 = vsel %vm342, %v438, %v439
      %vm443 = vcmask 891904
      %v444 = vsel %vm443, %v431, %v442
      %v445 = vsel %vm342, %v440, %v441
      %v446 = vsel %vm443, %v435, %v445
      %451 = vst [vmem:[#allocation3 + $0x60] sm:$0xff] %v444
      %452 = vst.msk [vmem:[#allocation3 + $0x68] sm:$0xf] %vm318, %v433
      %453 = vst [vmem:[#allocation3 + $0x6c] sm:$0xff] %v446
      %454 = vst.msk [vmem:[#allocation3 + $0x74] sm:$0xf] %vm318, %v437
      %v455 = vld [vmem:[%s300] sm:$0xff]
      %v456 = vld [vmem:[%s300 + $0x8] sm:$0xf]
      %v457 = vld [vmem:[%s300 + $0xc] sm:$0xff]
      %v458 = vld [vmem:[%s300 + $0x14] sm:$0xf]
      %463 = vrot.lane.b32.xlu0 %v455, 108
      %v464 = vpop.permute.xlu0 %463
      %465 = vrot.lane.b32.xlu0 %v456, 108
      %v466 = vpop.permute.xlu0 %465
      %467 = vrot.lane.b32.xlu0 %v457, 108
      %v468 = vpop.permute.xlu0 %467
      %469 = vrot.lane.b32.xlu0 %v458, 108
      %v470 = vpop.permute.xlu0 %469
      %v471 = vrot.slane %v464, 4
      %v472 = vrot.slane %v466, 4
      %v473 = vrot.slane %v468, 4
      %v474 = vrot.slane %v470, 4
      %v475 = vsel %vm342, %v471, %v472
      %vm476 = vcmask 883712
      %v477 = vsel %vm476, %v464, %v475
      %v478 = vsel %vm342, %v473, %v474
      %v479 = vsel %vm476, %v468, %v478
      %484 = vst [vmem:[#allocation3 + $0x78] sm:$0xff] %v477
      %485 = vst.msk [vmem:[#allocation3 + $0x80] sm:$0xf] %vm318, %v466
      %486 = vst [vmem:[#allocation3 + $0x84] sm:$0xff] %v479
      %487 = vst.msk [vmem:[#allocation3 + $0x8c] sm:$0xf] %vm318, %v470
      %v488 = vld [vmem:[%s300] sm:$0xff]
      %v489 = vld [vmem:[%s300 + $0x8] sm:$0xf]
      %v490 = vld [vmem:[%s300 + $0xc] sm:$0xff]
      %v491 = vld [vmem:[%s300 + $0x14] sm:$0xf]
      %496 = vrot.lane.b32.xlu0 %v488, 92
      %v497 = vpop.permute.xlu0 %496
      %498 = vrot.lane.b32.xlu0 %v489, 92
      %v499 = vpop.permute.xlu0 %498
      %500 = vrot.lane.b32.xlu0 %v490, 92
      %v501 = vpop.permute.xlu0 %500
      %502 = vrot.lane.b32.xlu0 %v491, 92
      %v503 = vpop.permute.xlu0 %502
      %v504 = vrot.slane %v497, 4
      %v505 = vrot.slane %v499, 4
      %v506 = vrot.slane %v501, 4
      %v507 = vrot.slane %v503, 4
      %v508 = vsel %vm342, %v504, %v505
      %vm509 = vcmask 752640
      %v510 = vsel %vm509, %v497, %v508
      %v511 = vsel %vm342, %v506, %v507
      %v512 = vsel %vm509, %v501, %v511
      %517 = vst [vmem:[#allocation3 + $0x90] sm:$0xff] %v510
      %518 = vst.msk [vmem:[#allocation3 + $0x98] sm:$0xf] %vm318, %v499
      %519 = vst [vmem:[#allocation3 + $0x9c] sm:$0xff] %v512
      %520 = vst.msk [vmem:[#allocation3 + $0xa4] sm:$0xf] %vm318, %v503
      %v521 = vld [vmem:[%s300] sm:$0xff]
      %v522 = vld [vmem:[%s300 + $0x8] sm:$0xf]
      %v523 = vld [vmem:[%s300 + $0xc] sm:$0xff]
      %v524 = vld [vmem:[%s300 + $0x14] sm:$0xf]
      %529 = vrot.lane.b32.xlu0 %v521, 91
      %v530 = vpop.permute.xlu0 %529
      %531 = vrot.lane.b32.xlu0 %v522, 91
      %v532 = vpop.permute.xlu0 %531
      %533 = vrot.lane.b32.xlu0 %v523, 91
      %v534 = vpop.permute.xlu0 %533
      %535 = vrot.lane.b32.xlu0 %v524, 91
      %v536 = vpop.permute.xlu0 %535
      %v537 = vrot.slane %v530, 4
      %v538 = vrot.slane %v532, 4
      %v539 = vrot.slane %v534, 4
      %v540 = vrot.slane %v536, 4
      %v541 = vsel %vm342, %v537, %v538
      %vm542 = vcmask 744448
      %v543 = vsel %vm542, %v530, %v541
      %v544 = vsel %vm342, %v539, %v540
      %v545 = vsel %vm542, %v534, %v544
      %550 = vst [vmem:[#allocation3 + $0xa8] sm:$0xff] %v543
      %551 = vst.msk [vmem:[#allocation3 + $0xb0] sm:$0xf] %vm318, %v532
      %552 = vst [vmem:[#allocation3 + $0xb4] sm:$0xff] %v545
      %553 = vst.msk [vmem:[#allocation3 + $0xbc] sm:$0xf] %vm318, %v536
      %v554 = vld [vmem:[%s300] sm:$0xff]
      %v555 = vld [vmem:[%s300 + $0x8] sm:$0xf]
      %v556 = vld [vmem:[%s300 + $0xc] sm:$0xff]
      %v557 = vld [vmem:[%s300 + $0x14] sm:$0xf]
      %562 = vrot.lane.b32.xlu0 %v554, 90
      %v563 = vpop.permute.xlu0 %562
      %564 = vrot.lane.b32.xlu0 %v555, 90
      %v565 = vpop.permute.xlu0 %564
      %566 = vrot.lane.b32.xlu0 %v556, 90
      %v567 = vpop.permute.xlu0 %566
      %568 = vrot.lane.b32.xlu0 %v557, 90
      %v569 = vpop.permute.xlu0 %568
      %v570 = vrot.slane %v563, 4
      %v571 = vrot.slane %v565, 4
      %v572 = vrot.slane %v567, 4
      %v573 = vrot.slane %v569, 4
      %v574 = vsel %vm342, %v570, %v571
      %vm575 = vcmask 736256
      %v576 = vsel %vm575, %v563, %v574
      %v577 = vsel %vm342, %v572, %v573
      %v578 = vsel %vm575, %v567, %v577
      %583 = vst [vmem:[#allocation3 + $0xc0] sm:$0xff] %v576
      %584 = vst.msk [vmem:[#allocation3 + $0xc8] sm:$0xf] %vm318, %v565
      %585 = vst [vmem:[#allocation3 + $0xcc] sm:$0xff] %v578
      %586 = vst.msk [vmem:[#allocation3 + $0xd4] sm:$0xf] %vm318, %v569
      %v587 = vld [vmem:[%s2] sm:$0xff]
      %v588 = vld [vmem:[%s2 + $0x8] sm:$0xff]
      %v589 = vld [vmem:[%s2 + $0x10] sm:$0xff]
      %v590 = vld [vmem:[%s2 + $0x18] sm:$0x33]
      %v591 = vld [vmem:[#allocation3] sm:$0xff]
      %v592 = vld [vmem:[#allocation3 + $0x8] sm:$0xf]
      %v593 = vld [vmem:[#allocation3 + $0xc] sm:$0xff]
      %v594 = vld [vmem:[#allocation3 + $0x14] sm:$0xf]
      %v595 = vld [vmem:[#allocation3 + $0x18] sm:$0xff]
      %v596 = vld [vmem:[#allocation3 + $0x20] sm:$0xf]
      %v597 = vld [vmem:[#allocation3 + $0x24] sm:$0xff]
      %v598 = vld [vmem:[#allocation3 + $0x2c] sm:$0xf]
      %v599 = vld [vmem:[#allocation3 + $0x30] sm:$0xff]
      %v600 = vld [vmem:[#allocation3 + $0x38] sm:$0xf]
      %v601 = vld [vmem:[#allocation3 + $0x3c] sm:$0xff]
      %v602 = vld [vmem:[#allocation3 + $0x44] sm:$0xf]
      %v603 = vld [vmem:[#allocation3 + $0x48] sm:$0xff]
      %v604 = vld [vmem:[#allocation3 + $0x50] sm:$0xf]
      %v605 = vld [vmem:[#allocation3 + $0x54] sm:$0xff]
      %v606 = vld [vmem:[#allocation3 + $0x5c] sm:$0xf]
      %v607 = vld [vmem:[#allocation3 + $0x60] sm:$0xff]
      %v608 = vld [vmem:[#allocation3 + $0x68] sm:$0xf]
      %v609 = vld [vmem:[#allocation3 + $0x6c] sm:$0xff]
      %v610 = vld [vmem:[#allocation3 + $0x74] sm:$0xf]
      %v611 = vld [vmem:[#allocation3 + $0x78] sm:$0xff]
      %v612 = vld [vmem:[#allocation3 + $0x80] sm:$0xf]
      %v613 = vld [vmem:[#allocation3 + $0x84] sm:$0xff]
      %v614 = vld [vmem:[#allocation3 + $0x8c] sm:$0xf]
      %v615 = vld [vmem:[#allocation3 + $0x90] sm:$0xff]
      %v616 = vld [vmem:[#allocation3 + $0x98] sm:$0xf]
      %v617 = vld [vmem:[#allocation3 + $0x9c] sm:$0xff]
      %v618 = vld [vmem:[#allocation3 + $0xa4] sm:$0xf]
      %v619 = vld [vmem:[#allocation3 + $0xa8] sm:$0xff]
      %v620 = vld [vmem:[#allocation3 + $0xb0] sm:$0xf]
      %v621 = vld [vmem:[#allocation3 + $0xb4] sm:$0xff]
      %v622 = vld [vmem:[#allocation3 + $0xbc] sm:$0xf]
      %v623 = vld [vmem:[#allocation3 + $0xc0] sm:$0xff]
      %v624 = vld [vmem:[#allocation3 + $0xc8] sm:$0xf]
      %v625 = vld [vmem:[#allocation3 + $0xcc] sm:$0xff]
      %v626 = vld [vmem:[#allocation3 + $0xd4] sm:$0xf]
      %v627 = vld [vmem:[%s3] sm:$0xff]
      %v628 = vld [vmem:[%s3 + $0x8] sm:$0xff]
      %v629 = vld [vmem:[%s3 + $0x10] sm:$0xff]
      %v630 = vld [vmem:[%s3 + $0x18] sm:$0xf]
      %632 = vset.pattern.permute.xlu0 0
      %633 = vperm.xlu0 %632, %v627
      %v634 = vpop.permute.xlu0 %633
      %637 = vset.pattern.permute.xlu0 0
      %638 = vperm.xlu0 %637, %v628
      %v639 = vpop.permute.xlu0 %638
      %642 = vset.pattern.permute.xlu0 0
      %643 = vperm.xlu0 %642, %v629
      %v644 = vpop.permute.xlu0 %643
      %647 = vset.pattern.permute.xlu0 0
      %648 = vperm.xlu0 %647, %v630
      %v649 = vpop.permute.xlu0 %648
      %v655 = vunpack.c.l.b16 %v587
      %v656 = vunpack.c.h.b16 %v587
      %v657 = vunpack.c.l.b16 %v588
      %v658 = vunpack.c.h.b16 %v588
      %v659 = vunpack.c.l.b16 %v589
      %v660 = vunpack.c.h.b16 %v589
      %v661 = vunpack.c.l.b16 %v590
      %v662 = vunpack.c.h.b16 %v590
      %v663 = vpack.c.b16 %v657, %v655
      %v664 = vpack.c.b16 %v658, %v656
      %v665 = vpack.c.b16 %v661, %v659
      %v666 = vpack.c.b16 %v662, %v660
      %v705 = vunpack.c.l.b16 %v591
      %v706 = vunpack.c.h.b16 %v591
      %v707 = vunpack.c.l.b16 %v592
      %v708 = vunpack.c.l.b16 %v593
      %v709 = vunpack.c.h.b16 %v593
      %v710 = vunpack.c.l.b16 %v594
      %v711 = vunpack.c.l.b16 %v595
      %v712 = vunpack.c.h.b16 %v595
      %v713 = vunpack.c.l.b16 %v596
      %v714 = vunpack.c.l.b16 %v597
      %v715 = vunpack.c.h.b16 %v597
      %v716 = vunpack.c.l.b16 %v598
      %v717 = vunpack.c.l.b16 %v599
      %v718 = vunpack.c.h.b16 %v599
      %v719 = vunpack.c.l.b16 %v600
      %v720 = vunpack.c.l.b16 %v601
      %v721 = vunpack.c.h.b16 %v601
      %v722 = vunpack.c.l.b16 %v602
      %v723 = vunpack.c.l.b16 %v603
      %v724 = vunpack.c.h.b16 %v603
      %v725 = vunpack.c.l.b16 %v604
      %v726 = vunpack.c.l.b16 %v605
      %v727 = vunpack.c.h.b16 %v605
      %v728 = vunpack.c.l.b16 %v606
      %v729 = vunpack.c.l.b16 %v607
      %v730 = vunpack.c.h.b16 %v607
      %v731 = vunpack.c.l.b16 %v608
      %v732 = vunpack.c.l.b16 %v609
      %v733 = vunpack.c.h.b16 %v609
      %v734 = vunpack.c.l.b16 %v610
      %v735 = vunpack.c.l.b16 %v611
      %v736 = vunpack.c.h.b16 %v611
      %v737 = vunpack.c.l.b16 %v612
      %v738 = vunpack.c.l.b16 %v613
      %v739 = vunpack.c.h.b16 %v613
      %v740 = vunpack.c.l.b16 %v614
      %v741 = vunpack.c.l.b16 %v615
      %v742 = vunpack.c.h.b16 %v615
      %v743 = vunpack.c.l.b16 %v616
      %v744 = vunpack.c.l.b16 %v617
      %v745 = vunpack.c.h.b16 %v617
      %v746 = vunpack.c.l.b16 %v618
      %v747 = vunpack.c.l.b16 %v619
      %v748 = vunpack.c.h.b16 %v619
      %v749 = vunpack.c.l.b16 %v620
      %v750 = vunpack.c.l.b16 %v621
      %v751 = vunpack.c.h.b16 %v621
      %v752 = vunpack.c.l.b16 %v622
      %v753 = vunpack.c.l.b16 %v623
      %v754 = vunpack.c.h.b16 %v623
      %v755 = vunpack.c.l.b16 %v624
      %v756 = vunpack.c.l.b16 %v625
      %v757 = vunpack.c.h.b16 %v625
      %v758 = vunpack.c.l.b16 %v626
      %v759 = vpack.c.b16 %v708, %v705
      %v760 = vpack.c.b16 %v709, %v706
      %v761 = vpack.c.b16 %v710, %v707
      %v762 = vpack.c.b16 %v714, %v711
      %v763 = vpack.c.b16 %v715, %v712
      %v764 = vpack.c.b16 %v716, %v713
      %v765 = vpack.c.b16 %v720, %v717
      %v766 = vpack.c.b16 %v721, %v718
      %v767 = vpack.c.b16 %v722, %v719
      %v768 = vpack.c.b16 %v726, %v723
      %v769 = vpack.c.b16 %v727, %v724
      %v770 = vpack.c.b16 %v728, %v725
      %v771 = vpack.c.b16 %v732, %v729
      %v772 = vpack.c.b16 %v733, %v730
      %v773 = vpack.c.b16 %v734, %v731
      %v774 = vpack.c.b16 %v738, %v735
      %v775 = vpack.c.b16 %v739, %v736
      %v776 = vpack.c.b16 %v740, %v737
      %v777 = vpack.c.b16 %v744, %v741
      %v778 = vpack.c.b16 %v745, %v742
      %v779 = vpack.c.b16 %v746, %v743
      %v780 = vpack.c.b16 %v750, %v747
      %v781 = vpack.c.b16 %v751, %v748
      %v782 = vpack.c.b16 %v752, %v749
      %v783 = vpack.c.b16 %v756, %v753
      %v784 = vpack.c.b16 %v757, %v754
      %v785 = vpack.c.b16 %v758, %v755
      %vm813 = vcmask 130048
      %v815 = vsel %vm813, %v664, 0
      %v818 = vsel %vm813, %v666, 0
      %820 = vmatprep.subr.bf16.mxu0 %v781
      %821 = vmatpush1.bf16.msra.mxu0 %v780
      %822 = vmatprep.subr.bf16.mxu0 %v778
      %823 = vmatpush1.bf16.msra.mxu0 %v777
      %824 = vmatprep.subr.bf16.mxu0 %v775
      %825 = vmatpush1.bf16.msra.mxu0 %v774
      %826 = vmatprep.subr.bf16.mxu0 %v772
      %827 = vmatpush1.bf16.msra.mxu0 %v771
      %828 = vmatprep.subr.bf16.mxu0 %v769
      %829 = vmatpush1.bf16.msra.mxu0 %v768
      %830 = vmatprep.subr.bf16.mxu0 %v766
      %831 = vmatpush1.bf16.msra.mxu0 %v765
      %832 = vmatprep.subr.bf16.mxu0 %v763
      %833 = vmatpush1.bf16.msra.mxu0 %v762
      %834 = vmatprep.subr.bf16.mxu0 %v760
      %835 = vmatpush1.bf16.msra.mxu0 %v759
      %836 = vmatprep.subr.bf16.mxu0 0
      %837 = vmatpush2.bf16.msra.mxu0 0
      %838 = vmatprep.subr.bf16.mxu0 0
      %839 = vmatpush2.bf16.msra.mxu0 0
      %840 = vmatprep.subr.bf16.mxu0 0
      %841 = vmatpush2.bf16.msra.mxu0 0
      %842 = vmatprep.subr.bf16.mxu0 0
      %843 = vmatpush2.bf16.msra.mxu0 0
      %844 = vmatprep.subr.bf16.mxu0 0
      %845 = vmatpush2.bf16.msra.mxu0 0
      %846 = vmatprep.subr.bf16.mxu0 0
      %847 = vmatpush2.bf16.msra.mxu0 0
      %848 = vmatprep.subr.bf16.mxu0 0
      %849 = vmatpush2.bf16.msra.mxu0 0
      %850 = vmatprep.subr.bf16.mxu0 %v784
      %851 = vmatpush2.bf16.msra.mxu0 %v783
      %852 = vmatprep.mubr.bf16.mxu0 %v815
      %853 = vmatmul.mubr.bf16.gmra.mxu0 %v663
      %v854 = vpop.f32.mrf.mxu0
      %v855 = vadd.f32 %v634, %v854
      %v856 = vpop.f32.mrf.mxu0
      %v857 = vadd.f32 %v634, %v856
      %v858 = vpop.f32.mrf.mxu0
      %v859 = vadd.f32 %v639, %v858
      %v860 = vpop.f32.mrf.mxu0
      %v861 = vadd.f32 %v639, %v860
      %862 = vmatprep.mubr.bf16.mxu0 %v818
      %863 = vmatmul.mubr.bf16.gmra.mxu0 %v665
      %v864 = vpop.f32.mrf.mxu0
      %v865 = vadd.f32 %v644, %v864
      %v866 = vpop.f32.mrf.mxu0
      %v867 = vadd.f32 %v644, %v866
      %v868 = vpop.f32.mrf.mxu0
      %v869 = vadd.f32 %v649, %v868
      %v870 = vpop.f32.mrf.mxu0
      %v871 = vadd.f32 %v649, %v870
      %872 = vdwg.mxu0
      %873 = vmatprep.subr.bf16.mxu0 0
      %874 = vmatpush1.bf16.msra.mxu0 %v782
      %875 = vmatprep.subr.bf16.mxu0 0
      %876 = vmatpush1.bf16.msra.mxu0 %v779
      %877 = vmatprep.subr.bf16.mxu0 0
      %878 = vmatpush1.bf16.msra.mxu0 %v776
      %879 = vmatprep.subr.bf16.mxu0 0
      %880 = vmatpush1.bf16.msra.mxu0 %v773
      %881 = vmatprep.subr.bf16.mxu0 0
      %882 = vmatpush1.bf16.msra.mxu0 %v770
      %883 = vmatprep.subr.bf16.mxu0 0
      %884 = vmatpush1.bf16.msra.mxu0 %v767
      %885 = vmatprep.subr.bf16.mxu0 0
      %886 = vmatpush1.bf16.msra.mxu0 %v764
      %887 = vmatprep.subr.bf16.mxu0 0
      %888 = vmatpush1.bf16.msra.mxu0 %v761
      %889 = vmatprep.subr.bf16.mxu0 0
      %890 = vmatpush2.bf16.msra.mxu0 0
      %891 = vmatprep.subr.bf16.mxu0 0
      %892 = vmatpush2.bf16.msra.mxu0 0
      %893 = vmatprep.subr.bf16.mxu0 0
      %894 = vmatpush2.bf16.msra.mxu0 0
      %895 = vmatprep.subr.bf16.mxu0 0
      %896 = vmatpush2.bf16.msra.mxu0 0
      %897 = vmatprep.subr.bf16.mxu0 0
      %898 = vmatpush2.bf16.msra.mxu0 0
      %899 = vmatprep.subr.bf16.mxu0 0
      %900 = vmatpush2.bf16.msra.mxu0 0
      %901 = vmatprep.subr.bf16.mxu0 0
      %902 = vmatpush2.bf16.msra.mxu0 0
      %903 = vmatprep.subr.bf16.mxu0 0
      %904 = vmatpush2.bf16.msra.mxu0 %v785
      %905 = vmatprep.mubr.bf16.mxu0 %v815
      %906 = vmatmul.mubr.bf16.gmra.mxu0 %v663
      %v907 = vpop.f32.mrf.mxu0
      %v908 = vadd.f32 %v634, %v907
      %v909 = vpop.f32.mrf.mxu0
      %v910 = vpop.f32.mrf.mxu0
      %v911 = vadd.f32 %v639, %v910
      %v912 = vpop.f32.mrf.mxu0
      %913 = vmatprep.mubr.bf16.mxu0 %v818
      %914 = vmatmul.mubr.bf16.gmra.mxu0 %v665
      %v915 = vpop.f32.mrf.mxu0
      %v916 = vadd.f32 %v644, %v915
      %v917 = vpop.f32.mrf.mxu0
      %v918 = vpop.f32.mrf.mxu0
      %v919 = vadd.f32 %v649, %v918
      %v920 = vpop.f32.mrf.mxu0
      %921 = vdwg.mxu0
      %v922 = vmax.f32 %v855, 0.0
      %v923 = vmax.f32 %v857, 0.0
      %v924 = vmax.f32 %v908, 0.0
      %v925 = vmax.f32 %v859, 0.0
      %v926 = vmax.f32 %v861, 0.0
      %v927 = vmax.f32 %v911, 0.0
      %v928 = vmax.f32 %v865, 0.0
      %v929 = vmax.f32 %v867, 0.0
      %v930 = vmax.f32 %v916, 0.0
      %v931 = vmax.f32 %v869, 0.0
      %v932 = vmax.f32 %v871, 0.0
      %v933 = vmax.f32 %v919, 0.0
      %v935 = vlaneseq
      %v936 = vshrl.u32 %v935, 7
      %v937 = vsub.s32 0, %v936
      %v938 = vrot.slane %v312, %v937
      %v939 = vlaneseq
      %v940 = vshrl.u32 %v939, 7
      %v941 = vsub.s32 1, %v940
      %v942 = vrot.slane %v312, %v941
      %v943 = vlaneseq
      %v944 = vshrl.u32 %v943, 7
      %v945 = vsub.s32 2, %v944
      %v946 = vrot.slane %v312, %v945
      %v950 = vmul.f32 %v928, %v938
      %v951 = vmul.f32 %v929, %v942
      %v952 = vmul.f32 %v930, %v946
      %v953 = vmul.f32 %v931, %v938
      %v954 = vmul.f32 %v932, %v942
      %v955 = vmul.f32 %v933, %v946
      %v956 = vpack.c.bf16 %v953, %v950
      %v957 = vpack.c.bf16 %v954, %v951
      %v958 = vpack.c.bf16 %v955, %v952
      %v962 = vunpack.c.l.b16 %v956
      %v963 = vunpack.c.l.b16 %v957
      %v964 = vunpack.c.l.b16 %v958
      %v965 = vunpack.c.h.b16 %v956
      %v966 = vunpack.c.h.b16 %v957
      %v967 = vunpack.c.h.b16 %v958
      %v968 = vpack.c.b16 %v963, %v962
      %v969 = vpack.c.b16 %v964, %v964
      %v970 = vpack.c.b16 %v966, %v965
      %v971 = vpack.c.b16 %v967, %v967
      %972 = vrot.lane.b32.xlu0 %v968, 19
      %v973 = vpop.permute.xlu0 %972
      %974 = vrot.lane.b32.xlu0 %v969, 19
      %v975 = vpop.permute.xlu0 %974
      %976 = vrot.lane.b32.xlu0 %v970, 19
      %v977 = vpop.permute.xlu0 %976
      %978 = vrot.lane.b32.xlu0 %v971, 19
      %v979 = vpop.permute.xlu0 %978
      %v980 = vrot.slane %v973, 4
      %v981 = vrot.slane %v977, 4
      %vm982 = vcmask 154624
      %v983 = vsel %vm982, %v980, %v973
      %v984 = vsel %vm982, %v980, %v975
      %v985 = vsel %vm982, %v981, %v977
      %v986 = vsel %vm982, %v981, %v979
      %vm991 = vcmask 1043608
      %vm992 = vcmask 1047556
      %vm993 = vmor %vm992, %vm991
      %994 = vst.msk [vmem:[#allocation2] sm:$0xff] %vm993, %v983
      %vm995 = vcmask 707584
      %996 = vst.msk [vmem:[#allocation2 + $0x8] sm:$0xf] %vm995, %v984
      %vm997 = vcmask 1041560
      %vm998 = vcmask 1045508
      %vm999 = vmor %vm998, %vm997
      %1000 = vst.msk [vmem:[#allocation2 + $0xc] sm:$0x33] %vm999, %v985
      %vm1001 = vcmask 705536
      %1002 = vst.msk [vmem:[#allocation2 + $0x14] sm:$0x3] %vm1001, %v986
      %v1003 = vld [vmem:[#allocation2] sm:$0xff]
      %v1004 = vld [vmem:[#allocation2 + $0x8] sm:$0xf]
      %v1005 = vld [vmem:[#allocation2 + $0xc] sm:$0xff]
      %v1006 = vld [vmem:[#allocation2 + $0x14] sm:$0xf]
      %1007 = vst [vmem:[#allocation3] sm:$0xff] %v1003
      %1008 = vst.msk [vmem:[#allocation3 + $0x8] sm:$0xf] %vm318, %v1004
      %1009 = vst [vmem:[#allocation3 + $0xc] sm:$0xff] %v1005
      %1010 = vst.msk [vmem:[#allocation3 + $0x14] sm:$0xf] %vm318, %v1006
      %v1011 = vld [vmem:[#allocation2] sm:$0xff]
      %v1012 = vld [vmem:[#allocation2 + $0x8] sm:$0xf]
      %v1013 = vld [vmem:[#allocation2 + $0xc] sm:$0xff]
      %v1014 = vld [vmem:[#allocation2 + $0x14] sm:$0xf]
      %1019 = vrot.lane.b32.xlu0 %v1011, 127
      %v1020 = vpop.permute.xlu0 %1019
      %1021 = vrot.lane.b32.xlu0 %v1012, 127
      %v1022 = vpop.permute.xlu0 %1021
      %1023 = vrot.lane.b32.xlu0 %v1013, 127
      %v1024 = vpop.permute.xlu0 %1023
      %1025 = vrot.lane.b32.xlu0 %v1014, 127
      %v1026 = vpop.permute.xlu0 %1025
      %v1027 = vrot.slane %v1020, 4
      %v1028 = vrot.slane %v1022, 4
      %v1029 = vrot.slane %v1024, 4
      %v1030 = vrot.slane %v1026, 4
      %v1031 = vsel %vm342, %v1027, %v1028
      %v1032 = vsel %vm344, %v1020, %v1031
      %v1033 = vsel %vm342, %v1029, %v1030
      %v1034 = vsel %vm344, %v1024, %v1033
      %1039 = vst [vmem:[#allocation3 + $0x18] sm:$0xff] %v1032
      %1040 = vst.msk [vmem:[#allocation3 + $0x20] sm:$0xf] %vm318, %v1022
      %1041 = vst [vmem:[#allocation3 + $0x24] sm:$0xff] %v1034
      %1042 = vst.msk [vmem:[#allocation3 + $0x2c] sm:$0xf] %vm318, %v1026
      %v1043 = vld [vmem:[#allocation2] sm:$0xff]
      %v1044 = vld [vmem:[#allocation2 + $0x8] sm:$0xf]
      %v1045 = vld [vmem:[#allocation2 + $0xc] sm:$0xff]
      %v1046 = vld [vmem:[#allocation2 + $0x14] sm:$0xf]
      %1051 = vrot.lane.b32.xlu0 %v1043, 126
      %v1052 = vpop.permute.xlu0 %1051
      %1053 = vrot.lane.b32.xlu0 %v1044, 126
      %v1054 = vpop.permute.xlu0 %1053
      %1055 = vrot.lane.b32.xlu0 %v1045, 126
      %v1056 = vpop.permute.xlu0 %1055
      %1057 = vrot.lane.b32.xlu0 %v1046, 126
      %v1058 = vpop.permute.xlu0 %1057
      %v1059 = vrot.slane %v1052, 4
      %v1060 = vrot.slane %v1054, 4
      %v1061 = vrot.slane %v1056, 4
      %v1062 = vrot.slane %v1058, 4
      %v1063 = vsel %vm342, %v1059, %v1060
      %v1064 = vsel %vm377, %v1052, %v1063
      %v1065 = vsel %vm342, %v1061, %v1062
      %v1066 = vsel %vm377, %v1056, %v1065
      %1071 = vst [vmem:[#allocation3 + $0x30] sm:$0xff] %v1064
      %1072 = vst.msk [vmem:[#allocation3 + $0x38] sm:$0xf] %vm318, %v1054
      %1073 = vst [vmem:[#allocation3 + $0x3c] sm:$0xff] %v1066
      %1074 = vst.msk [vmem:[#allocation3 + $0x44] sm:$0xf] %vm318, %v1058
      %v1075 = vld [vmem:[#allocation2] sm:$0xff]
      %v1076 = vld [vmem:[#allocation2 + $0x8] sm:$0xf]
      %v1077 = vld [vmem:[#allocation2 + $0xc] sm:$0xff]
      %v1078 = vld [vmem:[#allocation2 + $0x14] sm:$0xf]
      %1083 = vrot.lane.b32.xlu0 %v1075, 110
      %v1084 = vpop.permute.xlu0 %1083
      %1085 = vrot.lane.b32.xlu0 %v1076, 110
      %v1086 = vpop.permute.xlu0 %1085
      %1087 = vrot.lane.b32.xlu0 %v1077, 110
      %v1088 = vpop.permute.xlu0 %1087
      %1089 = vrot.lane.b32.xlu0 %v1078, 110
      %v1090 = vpop.permute.xlu0 %1089
      %v1091 = vrot.slane %v1084, 4
      %v1092 = vrot.slane %v1086, 4
      %v1093 = vrot.slane %v1088, 4
      %v1094 = vrot.slane %v1090, 4
      %v1095 = vsel %vm342, %v1091, %v1092
      %v1096 = vsel %vm410, %v1084, %v1095
      %v1097 = vsel %vm342, %v1093, %v1094
      %v1098 = vsel %vm410, %v1088, %v1097
      %1103 = vst [vmem:[#allocation3 + $0x48] sm:$0xff] %v1096
      %1104 = vst.msk [vmem:[#allocation3 + $0x50] sm:$0xf] %vm318, %v1086
      %1105 = vst [vmem:[#allocation3 + $0x54] sm:$0xff] %v1098
      %1106 = vst.msk [vmem:[#allocation3 + $0x5c] sm:$0xf] %vm318, %v1090
      %v1107 = vld [vmem:[#allocation2] sm:$0xff]
      %v1108 = vld [vmem:[#allocation2 + $0x8] sm:$0xf]
      %v1109 = vld [vmem:[#allocation2 + $0xc] sm:$0xff]
      %v1110 = vld [vmem:[#allocation2 + $0x14] sm:$0xf]
      %1115 = vrot.lane.b32.xlu0 %v1107, 109
      %v1116 = vpop.permute.xlu0 %1115
      %1117 = vrot.lane.b32.xlu0 %v1108, 109
      %v1118 = vpop.permute.xlu0 %1117
      %1119 = vrot.lane.b32.xlu0 %v1109, 109
      %v1120 = vpop.permute.xlu0 %1119
      %1121 = vrot.lane.b32.xlu0 %v1110, 109
      %v1122 = vpop.permute.xlu0 %1121
      %v1123 = vrot.slane %v1116, 4
      %v1124 = vrot.slane %v1118, 4
      %v1125 = vrot.slane %v1120, 4
      %v1126 = vrot.slane %v1122, 4
      %v1127 = vsel %vm342, %v1123, %v1124
      %v1128 = vsel %vm443, %v1116, %v1127
      %v1129 = vsel %vm342, %v1125, %v1126
      %v1130 = vsel %vm443, %v1120, %v1129
      %1135 = vst [vmem:[#allocation3 + $0x60] sm:$0xff] %v1128
      %1136 = vst.msk [vmem:[#allocation3 + $0x68] sm:$0xf] %vm318, %v1118
      %1137 = vst [vmem:[#allocation3 + $0x6c] sm:$0xff] %v1130
      %1138 = vst.msk [vmem:[#allocation3 + $0x74] sm:$0xf] %vm318, %v1122
      %v1139 = vld [vmem:[#allocation2] sm:$0xff]
      %v1140 = vld [vmem:[#allocation2 + $0x8] sm:$0xf]
      %v1141 = vld [vmem:[#allocation2 + $0xc] sm:$0xff]
      %v1142 = vld [vmem:[#allocation2 + $0x14] sm:$0xf]
      %1147 = vrot.lane.b32.xlu0 %v1139, 108
      %v1148 = vpop.permute.xlu0 %1147
      %1149 = vrot.lane.b32.xlu0 %v1140, 108
      %v1150 = vpop.permute.xlu0 %1149
      %1151 = vrot.lane.b32.xlu0 %v1141, 108
      %v1152 = vpop.permute.xlu0 %1151
      %1153 = vrot.lane.b32.xlu0 %v1142, 108
      %v1154 = vpop.permute.xlu0 %1153
      %v1155 = vrot.slane %v1148, 4
      %v1156 = vrot.slane %v1150, 4
      %v1157 = vrot.slane %v1152, 4
      %v1158 = vrot.slane %v1154, 4
      %v1159 = vsel %vm342, %v1155, %v1156
      %v1160 = vsel %vm476, %v1148, %v1159
      %v1161 = vsel %vm342, %v1157, %v1158
      %v1162 = vsel %vm476, %v1152, %v1161
      %1167 = vst [vmem:[#allocation3 + $0x78] sm:$0xff] %v1160
      %1168 = vst.msk [vmem:[#allocation3 + $0x80] sm:$0xf] %vm318, %v1150
      %1169 = vst [vmem:[#allocation3 + $0x84] sm:$0xff] %v1162
      %1170 = vst.msk [vmem:[#allocation3 + $0x8c] sm:$0xf] %vm318, %v1154
      %v1171 = vld [vmem:[#allocation2] sm:$0xff]
      %v1172 = vld [vmem:[#allocation2 + $0x8] sm:$0xf]
      %v1173 = vld [vmem:[#allocation2 + $0xc] sm:$0xff]
      %v1174 = vld [vmem:[#allocation2 + $0x14] sm:$0xf]
      %1179 = vrot.lane.b32.xlu0 %v1171, 92
      %v1180 = vpop.permute.xlu0 %1179
      %1181 = vrot.lane.b32.xlu0 %v1172, 92
      %v1182 = vpop.permute.xlu0 %1181
      %1183 = vrot.lane.b32.xlu0 %v1173, 92
      %v1184 = vpop.permute.xlu0 %1183
      %1185 = vrot.lane.b32.xlu0 %v1174, 92
      %v1186 = vpop.permute.xlu0 %1185
      %v1187 = vrot.slane %v1180, 4
      %v1188 = vrot.slane %v1182, 4
      %v1189 = vrot.slane %v1184, 4
      %v1190 = vrot.slane %v1186, 4
      %v1191 = vsel %vm342, %v1187, %v1188
      %v1192 = vsel %vm509, %v1180, %v1191
      %v1193 = vsel %vm342, %v1189, %v1190
      %v1194 = vsel %vm509, %v1184, %v1193
      %1199 = vst [vmem:[#allocation3 + $0x90] sm:$0xff] %v1192
      %1200 = vst.msk [vmem:[#allocation3 + $0x98] sm:$0xf] %vm318, %v1182
      %1201 = vst [vmem:[#allocation3 + $0x9c] sm:$0xff] %v1194
      %1202 = vst.msk [vmem:[#allocation3 + $0xa4] sm:$0xf] %vm318, %v1186
      %v1203 = vld [vmem:[#allocation2] sm:$0xff]
      %v1204 = vld [vmem:[#allocation2 + $0x8] sm:$0xf]
      %v1205 = vld [vmem:[#allocation2 + $0xc] sm:$0xff]
      %v1206 = vld [vmem:[#allocation2 + $0x14] sm:$0xf]
      %1211 = vrot.lane.b32.xlu0 %v1203, 91
      %v1212 = vpop.permute.xlu0 %1211
      %1213 = vrot.lane.b32.xlu0 %v1204, 91
      %v1214 = vpop.permute.xlu0 %1213
      %1215 = vrot.lane.b32.xlu0 %v1205, 91
      %v1216 = vpop.permute.xlu0 %1215
      %1217 = vrot.lane.b32.xlu0 %v1206, 91
      %v1218 = vpop.permute.xlu0 %1217
      %v1219 = vrot.slane %v1212, 4
      %v1220 = vrot.slane %v1214, 4
      %v1221 = vrot.slane %v1216, 4
      %v1222 = vrot.slane %v1218, 4
      %v1223 = vsel %vm342, %v1219, %v1220
      %v1224 = vsel %vm542, %v1212, %v1223
      %v1225 = vsel %vm342, %v1221, %v1222
      %v1226 = vsel %vm542, %v1216, %v1225
      %1231 = vst [vmem:[#allocation3 + $0xa8] sm:$0xff] %v1224
      %1232 = vst.msk [vmem:[#allocation3 + $0xb0] sm:$0xf] %vm318, %v1214
      %1233 = vst [vmem:[#allocation3 + $0xb4] sm:$0xff] %v1226
      %1234 = vst.msk [vmem:[#allocation3 + $0xbc] sm:$0xf] %vm318, %v1218
      %v1235 = vld [vmem:[#allocation2] sm:$0xff]
      %v1236 = vld [vmem:[#allocation2 + $0x8] sm:$0xf]
      %v1237 = vld [vmem:[#allocation2 + $0xc] sm:$0xff]
      %v1238 = vld [vmem:[#allocation2 + $0x14] sm:$0xf]
      %1243 = vrot.lane.b32.xlu0 %v1235, 90
      %v1244 = vpop.permute.xlu0 %1243
      %1245 = vrot.lane.b32.xlu0 %v1236, 90
      %v1246 = vpop.permute.xlu0 %1245
      %1247 = vrot.lane.b32.xlu0 %v1237, 90
      %v1248 = vpop.permute.xlu0 %1247
      %1249 = vrot.lane.b32.xlu0 %v1238, 90
      %v1250 = vpop.permute.xlu0 %1249
      %v1251 = vrot.slane %v1244, 4
      %v1252 = vrot.slane %v1246, 4
      %v1253 = vrot.slane %v1248, 4
      %v1254 = vrot.slane %v1250, 4
      %v1255 = vsel %vm342, %v1251, %v1252
      %v1256 = vsel %vm575, %v1244, %v1255
      %v1257 = vsel %vm342, %v1253, %v1254
      %v1258 = vsel %vm575, %v1248, %v1257
      %1263 = vst [vmem:[#allocation3 + $0xc0] sm:$0xff] %v1256
      %1264 = vst.msk [vmem:[#allocation3 + $0xc8] sm:$0xf] %vm318, %v1246
      %1265 = vst [vmem:[#allocation3 + $0xcc] sm:$0xff] %v1258
      %1266 = vst.msk [vmem:[#allocation3 + $0xd4] sm:$0xf] %vm318, %v1250
      %v1267 = vld [vmem:[%s4] sm:$0xff]
      %v1268 = vld [vmem:[%s4 + $0x8] sm:$0xff]
      %v1269 = vld [vmem:[#allocation3] sm:$0xff]
      %v1270 = vld [vmem:[#allocation3 + $0x8] sm:$0xf]
      %v1271 = vld [vmem:[#allocation3 + $0xc] sm:$0xff]
      %v1272 = vld [vmem:[#allocation3 + $0x14] sm:$0xf]
      %v1273 = vld [vmem:[#allocation3 + $0x18] sm:$0xff]
      %v1274 = vld [vmem:[#allocation3 + $0x20] sm:$0xf]
      %v1275 = vld [vmem:[#allocation3 + $0x24] sm:$0xff]
      %v1276 = vld [vmem:[#allocation3 + $0x2c] sm:$0xf]
      %v1277 = vld [vmem:[#allocation3 + $0x30] sm:$0xff]
      %v1278 = vld [vmem:[#allocation3 + $0x38] sm:$0xf]
      %v1279 = vld [vmem:[#allocation3 + $0x3c] sm:$0xff]
      %v1280 = vld [vmem:[#allocation3 + $0x44] sm:$0xf]
      %v1281 = vld [vmem:[#allocation3 + $0x48] sm:$0xff]
      %v1282 = vld [vmem:[#allocation3 + $0x50] sm:$0xf]
      %v1283 = vld [vmem:[#allocation3 + $0x54] sm:$0xff]
      %v1284 = vld [vmem:[#allocation3 + $0x5c] sm:$0xf]
      %v1285 = vld [vmem:[#allocation3 + $0x60] sm:$0xff]
      %v1286 = vld [vmem:[#allocation3 + $0x68] sm:$0xf]
      %v1287 = vld [vmem:[#allocation3 + $0x6c] sm:$0xff]
      %v1288 = vld [vmem:[#allocation3 + $0x74] sm:$0xf]
      %v1289 = vld [vmem:[#allocation3 + $0x78] sm:$0xff]
      %v1290 = vld [vmem:[#allocation3 + $0x80] sm:$0xf]
      %v1291 = vld [vmem:[#allocation3 + $0x84] sm:$0xff]
      %v1292 = vld [vmem:[#allocation3 + $0x8c] sm:$0xf]
      %v1293 = vld [vmem:[#allocation3 + $0x90] sm:$0xff]
      %v1294 = vld [vmem:[#allocation3 + $0x98] sm:$0xf]
      %v1295 = vld [vmem:[#allocation3 + $0x9c] sm:$0xff]
      %v1296 = vld [vmem:[#allocation3 + $0xa4] sm:$0xf]
      %v1297 = vld [vmem:[#allocation3 + $0xa8] sm:$0xff]
      %v1298 = vld [vmem:[#allocation3 + $0xb0] sm:$0xf]
      %v1299 = vld [vmem:[#allocation3 + $0xb4] sm:$0xff]
      %v1300 = vld [vmem:[#allocation3 + $0xbc] sm:$0xf]
      %v1301 = vld [vmem:[#allocation3 + $0xc0] sm:$0xff]
      %v1302 = vld [vmem:[#allocation3 + $0xc8] sm:$0xf]
      %v1303 = vld [vmem:[#allocation3 + $0xcc] sm:$0xff]
      %v1304 = vld [vmem:[#allocation3 + $0xd4] sm:$0xf]
      %v1305 = vld [vmem:[%s5] sm:$0xff]
      %v1306 = vld [vmem:[%s5 + $0x8] sm:$0xff]
      %1308 = vset.pattern.permute.xlu0 0
      %1309 = vperm.xlu0 %1308, %v1305
      %v1310 = vpop.permute.xlu0 %1309
      %1313 = vset.pattern.permute.xlu0 0
      %1314 = vperm.xlu0 %1313, %v1306
      %v1315 = vpop.permute.xlu0 %1314
      %v1319 = vunpack.c.l.b16 %v1267
      %v1320 = vunpack.c.h.b16 %v1267
      %v1321 = vunpack.c.l.b16 %v1268
      %v1322 = vunpack.c.h.b16 %v1268
      %v1323 = vpack.c.b16 %v1321, %v1319
      %v1324 = vpack.c.b16 %v1322, %v1320
      %v1362 = vunpack.c.l.b16 %v1269
      %v1363 = vunpack.c.h.b16 %v1269
      %v1364 = vunpack.c.l.b16 %v1270
      %v1365 = vunpack.c.l.b16 %v1271
      %v1366 = vunpack.c.h.b16 %v1271
      %v1367 = vunpack.c.l.b16 %v1272
      %v1368 = vunpack.c.l.b16 %v1273
      %v1369 = vunpack.c.h.b16 %v1273
      %v1370 = vunpack.c.l.b16 %v1274
      %v1371 = vunpack.c.l.b16 %v1275
      %v1372 = vunpack.c.h.b16 %v1275
      %v1373 = vunpack.c.l.b16 %v1276
      %v1374 = vunpack.c.l.b16 %v1277
      %v1375 = vunpack.c.h.b16 %v1277
      %v1376 = vunpack.c.l.b16 %v1278
      %v1377 = vunpack.c.l.b16 %v1279
      %v1378 = vunpack.c.h.b16 %v1279
      %v1379 = vunpack.c.l.b16 %v1280
      %v1380 = vunpack.c.l.b16 %v1281
      %v1381 = vunpack.c.h.b16 %v1281
      %v1382 = vunpack.c.l.b16 %v1282
      %v1383 = vunpack.c.l.b16 %v1283
      %v1384 = vunpack.c.h.b16 %v1283
      %v1385 = vunpack.c.l.b16 %v1284
      %v1386 = vunpack.c.l.b16 %v1285
      %v1387 = vunpack.c.h.b16 %v1285
      %v1388 = vunpack.c.l.b16 %v1286
      %v1389 = vunpack.c.l.b16 %v1287
      %v1390 = vunpack.c.h.b16 %v1287
      %v1391 = vunpack.c.l.b16 %v1288
      %v1392 = vunpack.c.l.b16 %v1289
      %v1393 = vunpack.c.h.b16 %v1289
      %v1394 = vunpack.c.l.b16 %v1290
      %v1395 = vunpack.c.l.b16 %v1291
      %v1396 = vunpack.c.h.b16 %v1291
      %v1397 = vunpack.c.l.b16 %v1292
      %v1398 = vunpack.c.l.b16 %v1293
      %v1399 = vunpack.c.h.b16 %v1293
      %v1400 = vunpack.c.l.b16 %v1294
      %v1401 = vunpack.c.l.b16 %v1295
      %v1402 = vunpack.c.h.b16 %v1295
      %v1403 = vunpack.c.l.b16 %v1296
      %v1404 = vunpack.c.l.b16 %v1297
      %v1405 = vunpack.c.h.b16 %v1297
      %v1406 = vunpack.c.l.b16 %v1298
      %v1407 = vunpack.c.l.b16 %v1299
      %v1408 = vunpack.c.h.b16 %v1299
      %v1409 = vunpack.c.l.b16 %v1300
      %v1410 = vunpack.c.l.b16 %v1301
      %v1411 = vunpack.c.h.b16 %v1301
      %v1412 = vunpack.c.l.b16 %v1302
      %v1413 = vunpack.c.l.b16 %v1303
      %v1414 = vunpack.c.h.b16 %v1303
      %v1415 = vunpack.c.l.b16 %v1304
      %v1416 = vpack.c.b16 %v1365, %v1362
      %v1417 = vpack.c.b16 %v1366, %v1363
      %v1418 = vpack.c.b16 %v1367, %v1364
      %v1419 = vpack.c.b16 %v1371, %v1368
      %v1420 = vpack.c.b16 %v1372, %v1369
      %v1421 = vpack.c.b16 %v1373, %v1370
      %v1422 = vpack.c.b16 %v1377, %v1374
      %v1423 = vpack.c.b16 %v1378, %v1375
      %v1424 = vpack.c.b16 %v1379, %v1376
      %v1425 = vpack.c.b16 %v1383, %v1380
      %v1426 = vpack.c.b16 %v1384, %v1381
      %v1427 = vpack.c.b16 %v1385, %v1382
      %v1428 = vpack.c.b16 %v1389, %v1386
      %v1429 = vpack.c.b16 %v1390, %v1387
      %v1430 = vpack.c.b16 %v1391, %v1388
      %v1431 = vpack.c.b16 %v1395, %v1392
      %v1432 = vpack.c.b16 %v1396, %v1393
      %v1433 = vpack.c.b16 %v1397, %v1394
      %v1434 = vpack.c.b16 %v1401, %v1398
      %v1435 = vpack.c.b16 %v1402, %v1399
      %v1436 = vpack.c.b16 %v1403, %v1400
      %v1437 = vpack.c.b16 %v1407, %v1404
      %v1438 = vpack.c.b16 %v1408, %v1405
      %v1439 = vpack.c.b16 %v1409, %v1406
      %v1440 = vpack.c.b16 %v1413, %v1410
      %v1441 = vpack.c.b16 %v1414, %v1411
      %v1442 = vpack.c.b16 %v1415, %v1412
      %v1471 = vsel %vm813, %v1324, 0
      %1473 = vmatprep.subr.bf16.mxu0 %v1438
      %1474 = vmatpush1.bf16.msra.mxu0 %v1437
      %1475 = vmatprep.subr.bf16.mxu0 %v1435
      %1476 = vmatpush1.bf16.msra.mxu0 %v1434
      %1477 = vmatprep.subr.bf16.mxu0 %v1432
      %1478 = vmatpush1.bf16.msra.mxu0 %v1431
      %1479 = vmatprep.subr.bf16.mxu0 %v1429
      %1480 = vmatpush1.bf16.msra.mxu0 %v1428
      %1481 = vmatprep.subr.bf16.mxu0 %v1426
      %1482 = vmatpush1.bf16.msra.mxu0 %v1425
      %1483 = vmatprep.subr.bf16.mxu0 %v1423
      %1484 = vmatpush1.bf16.msra.mxu0 %v1422
      %1485 = vmatprep.subr.bf16.mxu0 %v1420
      %1486 = vmatpush1.bf16.msra.mxu0 %v1419
      %1487 = vmatprep.subr.bf16.mxu0 %v1417
      %1488 = vmatpush1.bf16.msra.mxu0 %v1416
      %1489 = vmatprep.subr.bf16.mxu0 0
      %1490 = vmatpush2.bf16.msra.mxu0 0
      %1491 = vmatprep.subr.bf16.mxu0 0
      %1492 = vmatpush2.bf16.msra.mxu0 0
      %1493 = vmatprep.subr.bf16.mxu0 0
      %1494 = vmatpush2.bf16.msra.mxu0 0
      %1495 = vmatprep.subr.bf16.mxu0 0
      %1496 = vmatpush2.bf16.msra.mxu0 0
      %1497 = vmatprep.subr.bf16.mxu0 0
      %1498 = vmatpush2.bf16.msra.mxu0 0
      %1499 = vmatprep.subr.bf16.mxu0 0
      %1500 = vmatpush2.bf16.msra.mxu0 0
      %1501 = vmatprep.subr.bf16.mxu0 0
      %1502 = vmatpush2.bf16.msra.mxu0 0
      %1503 = vmatprep.subr.bf16.mxu0 %v1441
      %1504 = vmatpush2.bf16.msra.mxu0 %v1440
      %1505 = vmatprep.mubr.bf16.mxu0 %v1471
      %1506 = vmatmul.mubr.bf16.gmra.mxu0 %v1323
      %v1507 = vpop.f32.mrf.mxu0
      %v1508 = vadd.f32 %v1310, %v1507
      %v1509 = vpop.f32.mrf.mxu0
      %v1510 = vadd.f32 %v1310, %v1509
      %v1511 = vpop.f32.mrf.mxu0
      %v1512 = vadd.f32 %v1315, %v1511
      %v1513 = vpop.f32.mrf.mxu0
      %v1514 = vadd.f32 %v1315, %v1513
      %1515 = vdwg.mxu0
      %1516 = vmatprep.subr.bf16.mxu0 0
      %1517 = vmatpush1.bf16.msra.mxu0 %v1439
      %1518 = vmatprep.subr.bf16.mxu0 0
      %1519 = vmatpush1.bf16.msra.mxu0 %v1436
      %1520 = vmatprep.subr.bf16.mxu0 0
      %1521 = vmatpush1.bf16.msra.mxu0 %v1433
      %1522 = vmatprep.subr.bf16.mxu0 0
      %1523 = vmatpush1.bf16.msra.mxu0 %v1430
      %1524 = vmatprep.subr.bf16.mxu0 0
      %1525 = vmatpush1.bf16.msra.mxu0 %v1427
      %1526 = vmatprep.subr.bf16.mxu0 0
      %1527 = vmatpush1.bf16.msra.mxu0 %v1424
      %1528 = vmatprep.subr.bf16.mxu0 0
      %1529 = vmatpush1.bf16.msra.mxu0 %v1421
      %1530 = vmatprep.subr.bf16.mxu0 0
      %1531 = vmatpush1.bf16.msra.mxu0 %v1418
      %1532 = vmatprep.subr.bf16.mxu0 0
      %1533 = vmatpush2.bf16.msra.mxu0 0
      %1534 = vmatprep.subr.bf16.mxu0 0
      %1535 = vmatpush2.bf16.msra.mxu0 0
      %1536 = vmatprep.subr.bf16.mxu0 0
      %1537 = vmatpush2.bf16.msra.mxu0 0
      %1538 = vmatprep.subr.bf16.mxu0 0
      %1539 = vmatpush2.bf16.msra.mxu0 0
      %1540 = vmatprep.subr.bf16.mxu0 0
      %1541 = vmatpush2.bf16.msra.mxu0 0
      %1542 = vmatprep.subr.bf16.mxu0 0
      %1543 = vmatpush2.bf16.msra.mxu0 0
      %1544 = vmatprep.subr.bf16.mxu0 0
      %1545 = vmatpush2.bf16.msra.mxu0 0
      %1546 = vmatprep.subr.bf16.mxu0 0
      %1547 = vmatpush2.bf16.msra.mxu0 %v1442
      %1548 = vmatprep.mubr.bf16.mxu0 %v1471
      %1549 = vmatmul.mubr.bf16.gmra.mxu0 %v1323
      %v1550 = vpop.f32.mrf.mxu0
      %v1551 = vadd.f32 %v1310, %v1550
      %v1552 = vpop.f32.mrf.mxu0
      %v1553 = vpop.f32.mrf.mxu0
      %v1554 = vadd.f32 %v1315, %v1553
      %v1555 = vpop.f32.mrf.mxu0
      %1556 = vdwg.mxu0
      %v1557 = vmax.f32 %v1508, 0.0
      %v1558 = vmax.f32 %v1510, 0.0
      %v1559 = vmax.f32 %v1551, 0.0
      %v1560 = vmax.f32 %v1512, 0.0
      %v1561 = vmax.f32 %v1514, 0.0
      %v1562 = vmax.f32 %v1554, 0.0
      %v1563 = vmul.f32 %v1560, %v938
      %v1564 = vmul.f32 %v1561, %v942
      %v1565 = vmul.f32 %v1562, %v946
      %v1566 = vpack.c.bf16 %v1563, %v1563
      %v1567 = vpack.c.bf16 %v1564, %v1564
      %v1568 = vpack.c.bf16 %v1565, %v1565
      %v1572 = vunpack.c.l.b16 %v1566
      %v1573 = vunpack.c.l.b16 %v1567
      %v1574 = vunpack.c.l.b16 %v1568
      %v1575 = vpack.c.b16 %v1573, %v1572
      %v1576 = vpack.c.b16 %v1574, %v1574
      %1577 = vrot.lane.b32.xlu0 %v1575, 19
      %v1578 = vpop.permute.xlu0 %1577
      %1579 = vrot.lane.b32.xlu0 %v1576, 19
      %v1580 = vpop.permute.xlu0 %1579
      %v1581 = vrot.slane %v1578, 4
      %v1582 = vsel %vm982, %v1581, %v1578
      %v1583 = vsel %vm982, %v1581, %v1580
      %1586 = vst.msk [vmem:[#allocation2] sm:$0xff] %vm993, %v1582
      %1587 = vst.msk [vmem:[#allocation2 + $0x8] sm:$0xf] %vm995, %v1583
      %v1588 = vld [vmem:[#allocation2] sm:$0xff]
      %v1589 = vld [vmem:[#allocation2 + $0x8] sm:$0xf]
      %v1590 = vld [vmem:[#allocation2 + $0xc] sm:$0xff]
      %v1591 = vld [vmem:[#allocation2 + $0x14] sm:$0xf]
      %1592 = vst [vmem:[#allocation3] sm:$0xff] %v1588
      %1593 = vst.msk [vmem:[#allocation3 + $0x8] sm:$0xf] %vm318, %v1589
      %1594 = vst [vmem:[#allocation3 + $0xc] sm:$0xff] %v1590
      %1595 = vst.msk [vmem:[#allocation3 + $0x14] sm:$0xf] %vm318, %v1591
      %v1596 = vld [vmem:[#allocation2] sm:$0xff]
      %v1597 = vld [vmem:[#allocation2 + $0x8] sm:$0xf]
      %v1598 = vld [vmem:[#allocation2 + $0xc] sm:$0xff]
      %v1599 = vld [vmem:[#allocation2 + $0x14] sm:$0xf]
      %1604 = vrot.lane.b32.xlu0 %v1596, 127
      %v1605 = vpop.permute.xlu0 %1604
      %1606 = vrot.lane.b32.xlu0 %v1597, 127
      %v1607 = vpop.permute.xlu0 %1606
      %1608 = vrot.lane.b32.xlu0 %v1598, 127
      %v1609 = vpop.permute.xlu0 %1608
      %1610 = vrot.lane.b32.xlu0 %v1599, 127
      %v1611 = vpop.permute.xlu0 %1610
      %v1612 = vrot.slane %v1605, 4
      %v1613 = vrot.slane %v1607, 4
      %v1614 = vrot.slane %v1609, 4
      %v1615 = vrot.slane %v1611, 4
      %v1616 = vsel %vm342, %v1612, %v1613
      %v1617 = vsel %vm344, %v1605, %v1616
      %v1618 = vsel %vm342, %v1614, %v1615
      %v1619 = vsel %vm344, %v1609, %v1618
      %1624 = vst [vmem:[#allocation3 + $0x18] sm:$0xff] %v1617
      %1625 = vst.msk [vmem:[#allocation3 + $0x20] sm:$0xf] %vm318, %v1607
      %1626 = vst [vmem:[#allocation3 + $0x24] sm:$0xff] %v1619
      %1627 = vst.msk [vmem:[#allocation3 + $0x2c] sm:$0xf] %vm318, %v1611
      %v1628 = vld [vmem:[#allocation2] sm:$0xff]
      %v1629 = vld [vmem:[#allocation2 + $0x8] sm:$0xf]
      %v1630 = vld [vmem:[#allocation2 + $0xc] sm:$0xff]
      %v1631 = vld [vmem:[#allocation2 + $0x14] sm:$0xf]
      %1636 = vrot.lane.b32.xlu0 %v1628, 126
      %v1637 = vpop.permute.xlu0 %1636
      %1638 = vrot.lane.b32.xlu0 %v1629, 126
      %v1639 = vpop.permute.xlu0 %1638
      %1640 = vrot.lane.b32.xlu0 %v1630, 126
      %v1641 = vpop.permute.xlu0 %1640
      %1642 = vrot.lane.b32.xlu0 %v1631, 126
      %v1643 = vpop.permute.xlu0 %1642
      %v1644 = vrot.slane %v1637, 4
      %v1645 = vrot.slane %v1639, 4
      %v1646 = vrot.slane %v1641, 4
      %v1647 = vrot.slane %v1643, 4
      %v1648 = vsel %vm342, %v1644, %v1645
      %v1649 = vsel %vm377, %v1637, %v1648
      %v1650 = vsel %vm342, %v1646, %v1647
      %v1651 = vsel %vm377, %v1641, %v1650
      %1656 = vst [vmem:[#allocation3 + $0x30] sm:$0xff] %v1649
      %1657 = vst.msk [vmem:[#allocation3 + $0x38] sm:$0xf] %vm318, %v1639
      %1658 = vst [vmem:[#allocation3 + $0x3c] sm:$0xff] %v1651
      %1659 = vst.msk [vmem:[#allocation3 + $0x44] sm:$0xf] %vm318, %v1643
      %v1660 = vld [vmem:[#allocation2] sm:$0xff]
      %v1661 = vld [vmem:[#allocation2 + $0x8] sm:$0xf]
      %v1662 = vld [vmem:[#allocation2 + $0xc] sm:$0xff]
      %v1663 = vld [vmem:[#allocation2 + $0x14] sm:$0xf]
      %1668 = vrot.lane.b32.xlu0 %v1660, 110
      %v1669 = vpop.permute.xlu0 %1668
      %1670 = vrot.lane.b32.xlu0 %v1661, 110
      %v1671 = vpop.permute.xlu0 %1670
      %1672 = vrot.lane.b32.xlu0 %v1662, 110
      %v1673 = vpop.permute.xlu0 %1672
      %1674 = vrot.lane.b32.xlu0 %v1663, 110
      %v1675 = vpop.permute.xlu0 %1674
      %v1676 = vrot.slane %v1669, 4
      %v1677 = vrot.slane %v1671, 4
      %v1678 = vrot.slane %v1673, 4
      %v1679 = vrot.slane %v1675, 4
      %v1680 = vsel %vm342, %v1676, %v1677
      %v1681 = vsel %vm410, %v1669, %v1680
      %v1682 = vsel %vm342, %v1678, %v1679
      %v1683 = vsel %vm410, %v1673, %v1682
      %1688 = vst [vmem:[#allocation3 + $0x48] sm:$0xff] %v1681
      %1689 = vst.msk [vmem:[#allocation3 + $0x50] sm:$0xf] %vm318, %v1671
      %1690 = vst [vmem:[#allocation3 + $0x54] sm:$0xff] %v1683
      %1691 = vst.msk [vmem:[#allocation3 + $0x5c] sm:$0xf] %vm318, %v1675
      %v1692 = vld [vmem:[#allocation2] sm:$0xff]
      %v1693 = vld [vmem:[#allocation2 + $0x8] sm:$0xf]
      %v1694 = vld [vmem:[#allocation2 + $0xc] sm:$0xff]
      %v1695 = vld [vmem:[#allocation2 + $0x14] sm:$0xf]
      %1700 = vrot.lane.b32.xlu0 %v1692, 109
      %v1701 = vpop.permute.xlu0 %1700
      %1702 = vrot.lane.b32.xlu0 %v1693, 109
      %v1703 = vpop.permute.xlu0 %1702
      %1704 = vrot.lane.b32.xlu0 %v1694, 109
      %v1705 = vpop.permute.xlu0 %1704
      %1706 = vrot.lane.b32.xlu0 %v1695, 109
      %v1707 = vpop.permute.xlu0 %1706
      %v1708 = vrot.slane %v1701, 4
      %v1709 = vrot.slane %v1703, 4
      %v1710 = vrot.slane %v1705, 4
      %v1711 = vrot.slane %v1707, 4
      %v1712 = vsel %vm342, %v1708, %v1709
      %v1713 = vsel %vm443, %v1701, %v1712
      %v1714 = vsel %vm342, %v1710, %v1711
      %v1715 = vsel %vm443, %v1705, %v1714
      %1720 = vst [vmem:[#allocation3 + $0x60] sm:$0xff] %v1713
      %1721 = vst.msk [vmem:[#allocation3 + $0x68] sm:$0xf] %vm318, %v1703
      %1722 = vst [vmem:[#allocation3 + $0x6c] sm:$0xff] %v1715
      %1723 = vst.msk [vmem:[#allocation3 + $0x74] sm:$0xf] %vm318, %v1707
      %v1724 = vld [vmem:[#allocation2] sm:$0xff]
      %v1725 = vld [vmem:[#allocation2 + $0x8] sm:$0xf]
      %v1726 = vld [vmem:[#allocation2 + $0xc] sm:$0xff]
      %v1727 = vld [vmem:[#allocation2 + $0x14] sm:$0xf]
      %1732 = vrot.lane.b32.xlu0 %v1724, 108
      %v1733 = vpop.permute.xlu0 %1732
      %1734 = vrot.lane.b32.xlu0 %v1725, 108
      %v1735 = vpop.permute.xlu0 %1734
      %1736 = vrot.lane.b32.xlu0 %v1726, 108
      %v1737 = vpop.permute.xlu0 %1736
      %1738 = vrot.lane.b32.xlu0 %v1727, 108
      %v1739 = vpop.permute.xlu0 %1738
      %v1740 = vrot.slane %v1733, 4
      %v1741 = vrot.slane %v1735, 4
      %v1742 = vrot.slane %v1737, 4
      %v1743 = vrot.slane %v1739, 4
      %v1744 = vsel %vm342, %v1740, %v1741
      %v1745 = vsel %vm476, %v1733, %v1744
      %v1746 = vsel %vm342, %v1742, %v1743
      %v1747 = vsel %vm476, %v1737, %v1746
      %1752 = vst [vmem:[#allocation3 + $0x78] sm:$0xff] %v1745
      %1753 = vst.msk [vmem:[#allocation3 + $0x80] sm:$0xf] %vm318, %v1735
      %1754 = vst [vmem:[#allocation3 + $0x84] sm:$0xff] %v1747
      %1755 = vst.msk [vmem:[#allocation3 + $0x8c] sm:$0xf] %vm318, %v1739
      %v1756 = vld [vmem:[#allocation2] sm:$0xff]
      %v1757 = vld [vmem:[#allocation2 + $0x8] sm:$0xf]
      %v1758 = vld [vmem:[#allocation2 + $0xc] sm:$0xff]
      %v1759 = vld [vmem:[#allocation2 + $0x14] sm:$0xf]
      %1764 = vrot.lane.b32.xlu0 %v1756, 92
      %v1765 = vpop.permute.xlu0 %1764
      %1766 = vrot.lane.b32.xlu0 %v1757, 92
      %v1767 = vpop.permute.xlu0 %1766
      %1768 = vrot.lane.b32.xlu0 %v1758, 92
      %v1769 = vpop.permute.xlu0 %1768
      %1770 = vrot.lane.b32.xlu0 %v1759, 92
      %v1771 = vpop.permute.xlu0 %1770
      %v1772 = vrot.slane %v1765, 4
      %v1773 = vrot.slane %v1767, 4
      %v1774 = vrot.slane %v1769, 4
      %v1775 = vrot.slane %v1771, 4
      %v1776 = vsel %vm342, %v1772, %v1773
      %v1777 = vsel %vm509, %v1765, %v1776
      %v1778 = vsel %vm342, %v1774, %v1775
      %v1779 = vsel %vm509, %v1769, %v1778
      %1784 = vst [vmem:[#allocation3 + $0x90] sm:$0xff] %v1777
      %1785 = vst.msk [vmem:[#allocation3 + $0x98] sm:$0xf] %vm318, %v1767
      %1786 = vst [vmem:[#allocation3 + $0x9c] sm:$0xff] %v1779
      %1787 = vst.msk [vmem:[#allocation3 + $0xa4] sm:$0xf] %vm318, %v1771
      %v1788 = vld [vmem:[#allocation2] sm:$0xff]
      %v1789 = vld [vmem:[#allocation2 + $0x8] sm:$0xf]
      %v1790 = vld [vmem:[#allocation2 + $0xc] sm:$0xff]
      %v1791 = vld [vmem:[#allocation2 + $0x14] sm:$0xf]
      %1796 = vrot.lane.b32.xlu0 %v1788, 91
      %v1797 = vpop.permute.xlu0 %1796
      %1798 = vrot.lane.b32.xlu0 %v1789, 91
      %v1799 = vpop.permute.xlu0 %1798
      %1800 = vrot.lane.b32.xlu0 %v1790, 91
      %v1801 = vpop.permute.xlu0 %1800
      %1802 = vrot.lane.b32.xlu0 %v1791, 91
      %v1803 = vpop.permute.xlu0 %1802
      %v1804 = vrot.slane %v1797, 4
      %v1805 = vrot.slane %v1799, 4
      %v1806 = vrot.slane %v1801, 4
      %v1807 = vrot.slane %v1803, 4
      %v1808 = vsel %vm342, %v1804, %v1805
      %v1809 = vsel %vm542, %v1797, %v1808
      %v1810 = vsel %vm342, %v1806, %v1807
      %v1811 = vsel %vm542, %v1801, %v1810
      %1816 = vst [vmem:[#allocation3 + $0xa8] sm:$0xff] %v1809
      %1817 = vst.msk [vmem:[#allocation3 + $0xb0] sm:$0xf] %vm318, %v1799
      %1818 = vst [vmem:[#allocation3 + $0xb4] sm:$0xff] %v1811
      %1819 = vst.msk [vmem:[#allocation3 + $0xbc] sm:$0xf] %vm318, %v1803
      %v1820 = vld [vmem:[#allocation2] sm:$0xff]
      %v1821 = vld [vmem:[#allocation2 + $0x8] sm:$0xf]
      %v1822 = vld [vmem:[#allocation2 + $0xc] sm:$0xff]
      %v1823 = vld [vmem:[#allocation2 + $0x14] sm:$0xf]
      %1828 = vrot.lane.b32.xlu0 %v1820, 90
      %v1829 = vpop.permute.xlu0 %1828
      %1830 = vrot.lane.b32.xlu0 %v1821, 90
      %v1831 = vpop.permute.xlu0 %1830
      %1832 = vrot.lane.b32.xlu0 %v1822, 90
      %v1833 = vpop.permute.xlu0 %1832
      %1834 = vrot.lane.b32.xlu0 %v1823, 90
      %v1835 = vpop.permute.xlu0 %1834
      %v1836 = vrot.slane %v1829, 4
      %v1837 = vrot.slane %v1831, 4
      %v1838 = vrot.slane %v1833, 4
      %v1839 = vrot.slane %v1835, 4
      %v1840 = vsel %vm342, %v1836, %v1837
      %v1841 = vsel %vm575, %v1829, %v1840
      %v1842 = vsel %vm342, %v1838, %v1839
      %v1843 = vsel %vm575, %v1833, %v1842
      %1848 = vst [vmem:[#allocation3 + $0xc0] sm:$0xff] %v1841
      %1849 = vst.msk [vmem:[#allocation3 + $0xc8] sm:$0xf] %vm318, %v1831
      %1850 = vst [vmem:[#allocation3 + $0xcc] sm:$0xff] %v1843
      %1851 = vst.msk [vmem:[#allocation3 + $0xd4] sm:$0xf] %vm318, %v1835
      %v1852 = vld [vmem:[%s6] sm:$0xff]
      %v1853 = vld [vmem:[#allocation3] sm:$0xff]
      %v1854 = vld [vmem:[#allocation3 + $0x8] sm:$0xf]
      %v1855 = vld [vmem:[#allocation3 + $0xc] sm:$0xff]
      %v1856 = vld [vmem:[#allocation3 + $0x14] sm:$0xf]
      %v1857 = vld [vmem:[#allocation3 + $0x18] sm:$0xff]
      %v1858 = vld [vmem:[#allocation3 + $0x20] sm:$0xf]
      %v1859 = vld [vmem:[#allocation3 + $0x24] sm:$0xff]
      %v1860 = vld [vmem:[#allocation3 + $0x2c] sm:$0xf]
      %v1861 = vld [vmem:[#allocation3 + $0x30] sm:$0xff]
      %v1862 = vld [vmem:[#allocation3 + $0x38] sm:$0xf]
      %v1863 = vld [vmem:[#allocation3 + $0x3c] sm:$0xff]
      %v1864 = vld [vmem:[#allocation3 + $0x44] sm:$0xf]
      %v1865 = vld [vmem:[#allocation3 + $0x48] sm:$0xff]
      %v1866 = vld [vmem:[#allocation3 + $0x50] sm:$0xf]
      %v1867 = vld [vmem:[#allocation3 + $0x54] sm:$0xff]
      %v1868 = vld [vmem:[#allocation3 + $0x5c] sm:$0xf]
      %v1869 = vld [vmem:[#allocation3 + $0x60] sm:$0xff]
      %v1870 = vld [vmem:[#allocation3 + $0x68] sm:$0xf]
      %v1871 = vld [vmem:[#allocation3 + $0x6c] sm:$0xff]
      %v1872 = vld [vmem:[#allocation3 + $0x74] sm:$0xf]
      %v1873 = vld [vmem:[#allocation3 + $0x78] sm:$0xff]
      %v1874 = vld [vmem:[#allocation3 + $0x80] sm:$0xf]
      %v1875 = vld [vmem:[#allocation3 + $0x84] sm:$0xff]
      %v1876 = vld [vmem:[#allocation3 + $0x8c] sm:$0xf]
      %v1877 = vld [vmem:[#allocation3 + $0x90] sm:$0xff]
      %v1878 = vld [vmem:[#allocation3 + $0x98] sm:$0xf]
      %v1879 = vld [vmem:[#allocation3 + $0x9c] sm:$0xff]
      %v1880 = vld [vmem:[#allocation3 + $0xa4] sm:$0xf]
      %v1881 = vld [vmem:[#allocation3 + $0xa8] sm:$0xff]
      %v1882 = vld [vmem:[#allocation3 + $0xb0] sm:$0xf]
      %v1883 = vld [vmem:[#allocation3 + $0xb4] sm:$0xff]
      %v1884 = vld [vmem:[#allocation3 + $0xbc] sm:$0xf]
      %v1885 = vld [vmem:[#allocation3 + $0xc0] sm:$0xff]
      %v1886 = vld [vmem:[#allocation3 + $0xc8] sm:$0xf]
      %v1887 = vld [vmem:[#allocation3 + $0xcc] sm:$0xff]
      %v1888 = vld [vmem:[#allocation3 + $0xd4] sm:$0xf]
      %v1889 = vld [vmem:[%s7] sm:$0xff]
      %1891 = vset.pattern.permute.xlu0 0
      %1892 = vperm.xlu0 %1891, %v1889
      %v1893 = vpop.permute.xlu0 %1892
      %v1896 = vunpack.c.l.b16 %v1852
      %v1897 = vunpack.c.h.b16 %v1852
      %v1898 = vpack.c.b16 %v1896, %v1896
      %v1899 = vpack.c.b16 %v1897, %v1897
      %v1937 = vunpack.c.l.b16 %v1853
      %v1938 = vunpack.c.h.b16 %v1853
      %v1939 = vunpack.c.l.b16 %v1854
      %v1940 = vunpack.c.l.b16 %v1855
      %v1941 = vunpack.c.h.b16 %v1855
      %v1942 = vunpack.c.l.b16 %v1856
      %v1943 = vunpack.c.l.b16 %v1857
      %v1944 = vunpack.c.h.b16 %v1857
      %v1945 = vunpack.c.l.b16 %v1858
      %v1946 = vunpack.c.l.b16 %v1859
      %v1947 = vunpack.c.h.b16 %v1859
      %v1948 = vunpack.c.l.b16 %v1860
      %v1949 = vunpack.c.l.b16 %v1861
      %v1950 = vunpack.c.h.b16 %v1861
      %v1951 = vunpack.c.l.b16 %v1862
      %v1952 = vunpack.c.l.b16 %v1863
      %v1953 = vunpack.c.h.b16 %v1863
      %v1954 = vunpack.c.l.b16 %v1864
      %v1955 = vunpack.c.l.b16 %v1865
      %v1956 = vunpack.c.h.b16 %v1865
      %v1957 = vunpack.c.l.b16 %v1866
      %v1958 = vunpack.c.l.b16 %v1867
      %v1959 = vunpack.c.h.b16 %v1867
      %v1960 = vunpack.c.l.b16 %v1868
      %v1961 = vunpack.c.l.b16 %v1869
      %v1962 = vunpack.c.h.b16 %v1869
      %v1963 = vunpack.c.l.b16 %v1870
      %v1964 = vunpack.c.l.b16 %v1871
      %v1965 = vunpack.c.h.b16 %v1871
      %v1966 = vunpack.c.l.b16 %v1872
      %v1967 = vunpack.c.l.b16 %v1873
      %v1968 = vunpack.c.h.b16 %v1873
      %v1969 = vunpack.c.l.b16 %v1874
      %v1970 = vunpack.c.l.b16 %v1875
      %v1971 = vunpack.c.h.b16 %v1875
      %v1972 = vunpack.c.l.b16 %v1876
      %v1973 = vunpack.c.l.b16 %v1877
      %v1974 = vunpack.c.h.b16 %v1877
      %v1975 = vunpack.c.l.b16 %v1878
      %v1976 = vunpack.c.l.b16 %v1879
      %v1977 = vunpack.c.h.b16 %v1879
      %v1978 = vunpack.c.l.b16 %v1880
      %v1979 = vunpack.c.l.b16 %v1881
      %v1980 = vunpack.c.h.b16 %v1881
      %v1981 = vunpack.c.l.b16 %v1882
      %v1982 = vunpack.c.l.b16 %v1883
      %v1983 = vunpack.c.h.b16 %v1883
      %v1984 = vunpack.c.l.b16 %v1884
      %v1985 = vunpack.c.l.b16 %v1885
      %v1986 = vunpack.c.h.b16 %v1885
      %v1987 = vunpack.c.l.b16 %v1886
      %v1988 = vunpack.c.l.b16 %v1887
      %v1989 = vunpack.c.h.b16 %v1887
      %v1990 = vunpack.c.l.b16 %v1888
      %v1991 = vpack.c.b16 %v1940, %v1937
      %v1992 = vpack.c.b16 %v1941, %v1938
      %v1993 = vpack.c.b16 %v1942, %v1939
      %v1994 = vpack.c.b16 %v1946, %v1943
      %v1995 = vpack.c.b16 %v1947, %v1944
      %v1996 = vpack.c.b16 %v1948, %v1945
      %v1997 = vpack.c.b16 %v1952, %v1949
      %v1998 = vpack.c.b16 %v1953, %v1950
      %v1999 = vpack.c.b16 %v1954, %v1951
      %v2000 = vpack.c.b16 %v1958, %v1955
      %v2001 = vpack.c.b16 %v1959, %v1956
      %v2002 = vpack.c.b16 %v1960, %v1957
      %v2003 = vpack.c.b16 %v1964, %v1961
      %v2004 = vpack.c.b16 %v1965, %v1962
      %v2005 = vpack.c.b16 %v1966, %v1963
      %v2006 = vpack.c.b16 %v1970, %v1967
      %v2007 = vpack.c.b16 %v1971, %v1968
      %v2008 = vpack.c.b16 %v1972, %v1969
      %v2009 = vpack.c.b16 %v1976, %v1973
      %v2010 = vpack.c.b16 %v1977, %v1974
      %v2011 = vpack.c.b16 %v1978, %v1975
      %v2012 = vpack.c.b16 %v1982, %v1979
      %v2013 = vpack.c.b16 %v1983, %v1980
      %v2014 = vpack.c.b16 %v1984, %v1981
      %v2015 = vpack.c.b16 %v1988, %v1985
      %v2016 = vpack.c.b16 %v1989, %v1986
      %v2017 = vpack.c.b16 %v1990, %v1987
      %v2046 = vsel %vm813, %v1899, 0
      %2048 = vmatprep.subr.bf16.mxu0 %v2013
      %2049 = vmatpush1.bf16.msra.mxu0 %v2012
      %2050 = vmatprep.subr.bf16.mxu0 %v2010
      %2051 = vmatpush1.bf16.msra.mxu0 %v2009
      %2052 = vmatprep.subr.bf16.mxu0 %v2007
      %2053 = vmatpush1.bf16.msra.mxu0 %v2006
      %2054 = vmatprep.subr.bf16.mxu0 %v2004
      %2055 = vmatpush1.bf16.msra.mxu0 %v2003
      %2056 = vmatprep.subr.bf16.mxu0 %v2001
      %2057 = vmatpush1.bf16.msra.mxu0 %v2000
      %2058 = vmatprep.subr.bf16.mxu0 %v1998
      %2059 = vmatpush1.bf16.msra.mxu0 %v1997
      %2060 = vmatprep.subr.bf16.mxu0 %v1995
      %2061 = vmatpush1.bf16.msra.mxu0 %v1994
      %2062 = vmatprep.subr.bf16.mxu0 %v1992
      %2063 = vmatpush1.bf16.msra.mxu0 %v1991
      %2064 = vmatprep.subr.bf16.mxu0 0
      %2065 = vmatpush2.bf16.msra.mxu0 0
      %2066 = vmatprep.subr.bf16.mxu0 0
      %2067 = vmatpush2.bf16.msra.mxu0 0
      %2068 = vmatprep.subr.bf16.mxu0 0
      %2069 = vmatpush2.bf16.msra.mxu0 0
      %2070 = vmatprep.subr.bf16.mxu0 0
      %2071 = vmatpush2.bf16.msra.mxu0 0
      %2072 = vmatprep.subr.bf16.mxu0 0
      %2073 = vmatpush2.bf16.msra.mxu0 0
      %2074 = vmatprep.subr.bf16.mxu0 0
      %2075 = vmatpush2.bf16.msra.mxu0 0
      %2076 = vmatprep.subr.bf16.mxu0 0
      %2077 = vmatpush2.bf16.msra.mxu0 0
      %2078 = vmatprep.subr.bf16.mxu0 %v2016
      %2079 = vmatpush2.bf16.msra.mxu0 %v2015
      %2080 = vmatprep.mubr.bf16.mxu0 %v2046
      %2081 = vmatmul.mubr.bf16.gmra.mxu0 %v1898
      %v2082 = vpop.f32.mrf.mxu0
      %v2083 = vadd.f32 %v1893, %v2082
      %v2084 = vpop.f32.mrf.mxu0
      %v2085 = vadd.f32 %v1893, %v2084
      %v2086 = vpop.f32.mrf.mxu0
      %v2087 = vpop.f32.mrf.mxu0
      %2088 = vdwg.mxu0
      %2089 = vmatprep.subr.bf16.mxu0 0
      %2090 = vmatpush1.bf16.msra.mxu0 %v2014
      %2091 = vmatprep.subr.bf16.mxu0 0
      %2092 = vmatpush1.bf16.msra.mxu0 %v2011
      %2093 = vmatprep.subr.bf16.mxu0 0
      %2094 = vmatpush1.bf16.msra.mxu0 %v2008
      %2095 = vmatprep.subr.bf16.mxu0 0
      %2096 = vmatpush1.bf16.msra.mxu0 %v2005
      %2097 = vmatprep.subr.bf16.mxu0 0
      %2098 = vmatpush1.bf16.msra.mxu0 %v2002
      %2099 = vmatprep.subr.bf16.mxu0 0
      %2100 = vmatpush1.bf16.msra.mxu0 %v1999
      %2101 = vmatprep.subr.bf16.mxu0 0
      %2102 = vmatpush1.bf16.msra.mxu0 %v1996
      %2103 = vmatprep.subr.bf16.mxu0 0
      %2104 = vmatpush1.bf16.msra.mxu0 %v1993
      %2105 = vmatprep.subr.bf16.mxu0 0
      %2106 = vmatpush2.bf16.msra.mxu0 0
      %2107 = vmatprep.subr.bf16.mxu0 0
      %2108 = vmatpush2.bf16.msra.mxu0 0
      %2109 = vmatprep.subr.bf16.mxu0 0
      %2110 = vmatpush2.bf16.msra.mxu0 0
      %2111 = vmatprep.subr.bf16.mxu0 0
      %2112 = vmatpush2.bf16.msra.mxu0 0
      %2113 = vmatprep.subr.bf16.mxu0 0
      %2114 = vmatpush2.bf16.msra.mxu0 0
      %2115 = vmatprep.subr.bf16.mxu0 0
      %2116 = vmatpush2.bf16.msra.mxu0 0
      %2117 = vmatprep.subr.bf16.mxu0 0
      %2118 = vmatpush2.bf16.msra.mxu0 0
      %2119 = vmatprep.subr.bf16.mxu0 0
      %2120 = vmatpush2.bf16.msra.mxu0 %v2017
      %2121 = vmatprep.mubr.bf16.mxu0 %v2046
      %2122 = vmatmul.mubr.bf16.gmra.mxu0 %v1898
      %v2123 = vpop.f32.mrf.mxu0
      %v2124 = vadd.f32 %v1893, %v2123
      %v2125 = vpop.f32.mrf.mxu0
      %v2126 = vpop.f32.mrf.mxu0
      %v2127 = vpop.f32.mrf.mxu0
      %2128 = vdwg.mxu0
      %v2129 = vmax.f32 %v2083, 0.0
      %v2130 = vmax.f32 %v2085, 0.0
      %v2131 = vmax.f32 %v2124, 0.0
      %2132 = vst [vmem:[%s305] sm:$0xff] %v922
      %2133 = vst [vmem:[%s305 + $0x8] sm:$0xff] %v923
      %vm2134 = vcmask 556032
      %2135 = vst.msk [vmem:[%s305 + $0x10] sm:$0xff] %vm2134, %v924
      %2136 = vst [vmem:[%s305 + $0x18] sm:$0xff] %v1557
      %2137 = vst [vmem:[%s305 + $0x20] sm:$0xff] %v1558
      %2138 = vst.msk [vmem:[%s305 + $0x28] sm:$0xff] %vm2134, %v1559
      %2139 = vst [vmem:[%s305 + $0x30] sm:$0xff] %v2129
      %2140 = vst [vmem:[%s305 + $0x38] sm:$0xff] %v2130
      %2141 = vst.msk [vmem:[%s305 + $0x40] sm:$0xff] %vm2134, %v2131
      %2142 = vst [vmem:[%s305 + $0x48] sm:$0xff] %v925
      %2143 = vst [vmem:[%s305 + $0x50] sm:$0xff] %v926
      %2144 = vst.msk [vmem:[%s305 + $0x58] sm:$0xff] %vm2134, %v927
      %p2145 = scmp.lt.s32.totalorder %s19, 1
      %s2146 = scalar_select %p2145, %s19, 1
      %s2147 = smul.addr %s2146, 12
      %s2148 = smul.addr %s2147, 8
      %s2149 = scalar_lea.vmem %s8, %s2148
      // Predicated region
      $region53: #{inception_block_v4.1} parent=51 // pred_check
        %p2150 = pneg %p210
      $region54: #{inception_block_v4.1} parent=51 // pred_check_branch
        %2152 = sbr.rel (%p2150) target = $region56
      $region55: #{inception_block_v4.1} parent=51 // pred_region
        _
      $region56: #{inception_block_v4.1} parent=51 // pred_fallthru
        _
    $region52: #{inception_block_v4.1} parent=5 // pred_fallthru
      _
    %p2153 = scmp.le.s32.totalorder 2, %s14
    // Predicated region
    $region57: #{inception_block_v4.1} parent=5 // pred_check
      %p2154 = pneg %p2153
    $region58: #{inception_block_v4.1} parent=5 // pred_check_branch
      %2156 = sbr.rel (%p2154) target = $region60
    $region59: #{inception_block_v4.1} parent=5 // pred_region
      %s2157 = ssub.s32 %s14, 2
      // Predicated region
      $region61: #{inception_block_v4.1} parent=59 // pred_check
        %p2158 = pneg %p216
      $region62: #{inception_block_v4.1} parent=59 // pred_check_branch
        %2160 = sbr.rel (%p2158) target = $region64
      $region63: #{inception_block_v4.1} parent=59 // pred_region
        %p2161 = scmp.lt.s32.totalorder %s20, 1
        %s2162 = scalar_select %p2161, %s20, 1
        %s2163 = smul.addr %s2162, 12
        %s2164 = smul.addr %s2163, 8
        %s2165 = scalar_lea.vmem %s8, %s2164
      $region64: #{inception_block_v4.1} parent=59 // pred_fallthru
        _
    $region60: #{inception_block_v4.1} parent=5 // pred_fallthru
      _
  $region6: #{inception_block_v4.1} parent=0 // loop_footer
    %s18 = sadd.s32 1, %s14
  $region7: #{inception_block_v4.1} parent=0 // loop_footer_branch
    %13 = sbr.rel target = $region3
  $region8: #{inception_block_v4.1} parent=0 // loop_exit
    _

</llo_original>
